<compile_context>
chip_gen: v7x
topology: tpu7x:2x2x1
jax: 0.10.0
libtpu: 0.0.40
codegen_flags: <defaults>
</compile_context>

<pallas_src>
import jax
import jax.numpy as jnp
from jax.experimental import pallas as pl
from jax.experimental.pallas import tpu as pltpu


def attention_kernel(dh_ref, eo_ref, w_dec_ref, w_enc_ref, b_ref, v_ref, out_ref):
    # dh_ref : (TB, dec_hid)       decoder hidden for this batch tile
    # eo_ref : (S, TB, 2*enc_hid)  seq-major encoder outputs for this batch tile
    # w_dec  : (dec_hid, A)
    # w_enc  : (2*enc_hid, A)
    # b_ref  : (1, A)
    # v_ref  : (1, A)
    # out_ref: (TB, S)             attention weights, src_len on the lane axis
    S, TB, E2 = eo_ref.shape
    A = w_enc_ref.shape[1]

    # Decoder projection + bias, once per batch tile (M = TB rows).
    h_dec = jnp.dot(dh_ref[...], w_dec_ref[...],
                    preferred_element_type=jnp.float32) + b_ref[...]        # (TB, A)

    # Encoder projection: a single (S*TB, E2) @ (E2, A) MXU matmul.
    # TB is a multiple of 8 (16 in bf16 mode) or == B, so this reshape is
    # sublane-tile aligned.
    eo2 = eo_ref[...].reshape(S * TB, E2)
    h_enc = jnp.dot(eo2, w_enc_ref[...],
                    preferred_element_type=jnp.float32).reshape(S, TB, A)

    # NOTE: with small A (< 128) the (S, TB, A) intermediates under-fill lanes;
    # if profiling shows the EUP (tanh) or VPU as the saturated slot rather
    # than DMA, compute the projection transposed (A on sublanes, S*TB on
    # lanes) instead.  At realistic shapes this kernel is HBM-bound, so the
    # simple layout is kept.
    energy = jnp.tanh(h_enc + h_dec[None, :, :])                            # (S, TB, A)

    # scores[s, b] = <energy[s, b, :], v>  (lane reduce over A), then transpose
    # the small (S, TB) matrix so src_len sits on the lane axis.
    scores_sb = jnp.sum(energy * v_ref[...].reshape(1, 1, A), axis=-1)      # (S, TB)
    scores = jnp.transpose(scores_sb)                                       # (TB, S)

    # Numerically stable softmax over src_len (lane axis).
    m = jnp.max(scores, axis=-1, keepdims=True)                             # (TB, 1)
    ex = jnp.exp(scores - m)
    denom = jnp.sum(ex, axis=-1, keepdims=True)                             # (TB, 1)
    # EUP fast reciprocal + one Newton step: keeps the divide off the VPU while
    # preserving f32 accuracy (1e-5 check in __main__).
    r = pl.reciprocal(denom, approx=True)
    r = r * (2.0 - denom * r)
    out_ref[...] = (ex * r).astype(out_ref.dtype)


def _tpu_generation_info():
    """Best-effort query of the current TPU generation.

    Returns (vmem_capacity_bytes, two_tensorcores, mxu_rows).
      * v5e / v6e: 128 MiB VMEM, 1 TensorCore.
      * v7x      :  64 MiB VMEM per TC, 2 TensorCores per chip.
      * MXU pass height: 128 rows on v5e (4x128^2), 256 on v6e/v7x (2x256^2).
    Falls back to conservative v7x-like numbers if the query fails.
    """
    try:
        vmem_capacity = int(pltpu.get_tpu_info().vmem_capacity_bytes)
    except Exception:
        vmem_capacity = 64 * 1024 * 1024
    kind = ""
    try:
        kind = jax.devices()[0].device_kind.lower()
    except Exception:
        pass
    is_v5e = ("v5e" in kind) or ("v5 lite" in kind) or ("v5lite" in kind)
    two_cores = ("v7" in kind) or (vmem_capacity <= 64 * 1024 * 1024)
    mxu_rows = 128 if is_v5e else 256
    return vmem_capacity, two_cores, mxu_rows


def _pick_batch_tile(B, S, E2, A, dec_hid, enc_itemsize, *,
                     budget_bytes, two_cores, mxu_rows):
    """Rows of the batch processed per grid step.

    The budget is derived from the actual chip's VMEM (see attention_forward),
    so v5e/v6e get ~2x the tile headroom of v7x.  Bigger TB -> bigger DMA
    tiles and fewer ~0.35us grid steps; the kernel is HBM-bound on
    encoder_outputs, so DMA tile size is the first-order knob.

      * f32 encoder: TB % 8 == 0 (sublane tile); bf16 encoder: TB % 16 == 0
        (two packed rows per sublane), otherwise TB == B.
      * single-TC chips (v5e/v6e): take the largest TB that fits, even if
        grid == (1,) -- splitting only adds per-step overhead.
      * v7x (2 TCs, 'parallel' axis): prefer an EVEN number of grid steps so
        the cores stay balanced; otherwise at least 2 steps.
      * soft preference for S*TB being a multiple of the MXU pass height
        (128 on v5e, 256 on v6e/v7x) when it doesn't cost much tile size.
    """
    align = 8 if enc_itemsize >= 4 else 16
    if B % align != 0 or B <= align:
        return B  # single full-batch block (block dims must equal the full dim)

    # Per-TB-row VMEM bytes: double-buffered I/O tiles + f32 intermediates.
    per_row = (2 * S * E2 * enc_itemsize      # encoder tile (double-buffered)
               + 2 * dec_hid * 4              # decoder-hidden tile
               + 2 * S * 4                    # output tile
               + S * E2 * enc_itemsize        # in-kernel reshape copy of eo
               + 3 * S * A * 4                # h_enc / energy / weighted energy
               + 4 * S * 4)                   # scores / transpose / exp / misc
    # Grid-invariant operands; counted double-buffered as the worst case (the
    # Buffered(1) specs below reclaim half of this when supported).
    fixed = 2 * (dec_hid * A * 4 + E2 * A * enc_itemsize + 2 * A * 4)
    avail = max(budget_bytes - fixed, per_row * align)
    max_rows = max(align, avail // max(per_row, 1))

    cands = [tb for tb in range(align, B + 1, align)
             if B % tb == 0 and tb <= max_rows]
    if not cands:
        cands = [align]

    def _best(cs):
        best = max(cs)
        mxu = [tb for tb in cs if (S * tb) % mxu_rows == 0]
        if mxu and 2 * max(mxu) >= best:   # don't pay >2x tile size for MXU fill
            return max(mxu)
        return best

    if two_cores:
        even = [tb for tb in cands if (B // tb) % 2 == 0]
        if even:
            return _best(even)
        multi = [tb for tb in cands if B // tb >= 2]
        if multi:
            return _best(multi)
    return _best(cands)


def attention_forward(decoder_hidden, encoder_outputs, W, b, v,
                      *, batch_tile=None, encoder_in_bf16=False,
                      single_buffer_weights=True):
    """
    decoder_hidden : [B, dec_hid]
    encoder_outputs: [S, B, 2*enc_hid]   (seq-major, as in the PyTorch module)
    W              : [attn_in, attn_dim]  rows ordered [decoder | encoder]
                                          (matches torch.cat((dec, enc)))
    b              : [attn_dim]
    v              : [attn_dim]
    returns        : [B, S] softmax attention weights
    """
    S, B, E2 = encoder_outputs.shape
    dec_hid = decoder_hidden.shape[1]
    A = W.shape[1]

    W_dec = W[:dec_hid]                     # (dec_hid, A)
    W_enc = W[dec_hid:]                     # (E2, A)
    b2 = b.reshape(1, A)
    v2 = v.reshape(1, A)

    if encoder_in_bf16:
        # Memory-bound at realistic shapes: halving the dominant input's HBM
        # bytes pays off on every generation (v5e's slow HBM included) -- the
        # bf16 data only feeds the MXU, which is bf16-native on all chips.
        # Accumulation / tanh / softmax stay f32 (preferred_element_type).
        encoder_outputs = encoder_outputs.astype(jnp.bfloat16)
        W_enc = W_enc.astype(jnp.bfloat16)
    enc_itemsize = encoder_outputs.dtype.itemsize

    # Generation-aware VMEM budget: raise the scoped limit explicitly instead
    # of sizing every chip to the 12-16 MiB worst-case default.
    vmem_capacity, two_cores, mxu_rows = _tpu_generation_info()
    vmem_limit = int(vmem_capacity * 0.85)       # ~108 MiB v5e/v6e, ~54 MiB v7x
    tile_budget = int(vmem_limit * 0.75)         # headroom for compiler scratch

    TB = batch_tile if batch_tile is not None else _pick_batch_tile(
        B, S, E2, A, dec_hid, enc_itemsize,
        budget_bytes=tile_budget, two_cores=two_cores, mxu_rows=mxu_rows)
    assert B % TB == 0, (B, TB)
    if encoder_in_bf16:
        assert TB % 16 == 0 or TB == B, (TB, "bf16 needs TB%16==0 or TB==B")
    grid = (B // TB,)

    # TODO(synk): for very long src_len, add a second ("arbitrary") grid axis
    # over S-chunks with an online softmax so the (S, TB, E2) block (plus its
    # double buffer) stays inside VMEM even on v7x (64 MiB); the generation-
    # aware budget above already halves the tile on v7x, which covers typical
    # seq2seq sequence lengths.

    cost = pl.CostEstimate(
        flops=2 * B * S * E2 * A + 2 * B * dec_hid * A + 2 * B * S * A,
        transcendentals=B * S * A + B * S + B,       # tanh + exp + reciprocal
        bytes_accessed=(enc_itemsize * S * B * E2
                        + W_enc.dtype.itemsize * E2 * A
                        + 4 * (B * dec_hid + dec_hid * A + 2 * A + B * S)),
    )

    def _make_call(use_single_buffer):
        # W_dec / W_enc / b / v never change across grid steps: single-buffer
        # them so the second (prefetch) buffer's VMEM goes back into TB.
        wkw = dict(pipeline_mode=pl.Buffered(1)) if use_single_buffer else {}
        in_specs = [
            pl.BlockSpec((TB, dec_hid), lambda i: (i, 0)),
            # Slice the seq-major [S, B, E2] tensor in place: no host transpose.
            pl.BlockSpec((S, TB, E2), lambda i: (0, i, 0)),
            pl.BlockSpec((dec_hid, A), lambda i: (0, 0), **wkw),
            pl.BlockSpec((E2, A), lambda i: (0, 0), **wkw),
            pl.BlockSpec((1, A), lambda i: (0, 0), **wkw),
            pl.BlockSpec((1, A), lambda i: (0, 0), **wkw),
        ]
        return pl.pallas_call(
            attention_kernel,
            out_shape=jax.ShapeDtypeStruct((B, S), jnp.float32),
            grid=grid,
            in_specs=in_specs,
            out_specs=pl.BlockSpec((TB, S), lambda i: (i, 0)),
            compiler_params=pltpu.CompilerParams(
                dimension_semantics=("parallel",),
                vmem_limit_bytes=vmem_limit),
            cost_estimate=cost,
        )

    args = (decoder_hidden, encoder_outputs, W_dec, W_enc, b2, v2)
    if single_buffer_weights:
        try:
            return _make_call(True)(*args)
        except Exception:
            # pipeline_mode unsupported on this jax build -> default buffering.
            pass
    return _make_call(False)(*args)


def _reference(decoder_hidden, encoder_outputs, W, b, v):
    # Pure-JAX reference mirroring the PyTorch forward exactly.
    S = encoder_outputs.shape[0]
    dh = jnp.repeat(decoder_hidden[:, None, :], S, axis=1)    # (B, S, dec_hid)
    eo = jnp.transpose(encoder_outputs, (1, 0, 2))            # (B, S, 2E)
    concat = jnp.concatenate([dh, eo], axis=2)                # (B, S, attn_in)
    energy = jnp.tanh(concat @ W + b)                         # (B, S, A)
    attention = (energy @ v[:, None])[..., 0]                 # (B, S)
    return jax.nn.softmax(attention, axis=1)


if __name__ == "__main__":
    # Small, deterministic example shapes consistent with the module.
    enc_hid_dim = 16
    dec_hid_dim = 32
    attn_dim = 24
    B = 16
    S = 16
    attn_in = enc_hid_dim * 2 + dec_hid_dim

    key = jax.random.PRNGKey(0)
    k_dh, k_eo, k_W, k_b, k_v = jax.random.split(key, 5)

    decoder_hidden = jax.random.normal(k_dh, (B, dec_hid_dim), jnp.float32)
    encoder_outputs = jax.random.normal(k_eo, (S, B, 2 * enc_hid_dim), jnp.float32)

    # Deterministic parameter init (PyTorch-Linear-style uniform bounds).
    bound_attn = 1.0 / jnp.sqrt(attn_in)
    W = jax.random.uniform(k_W, (attn_in, attn_dim), jnp.float32,
                           -bound_attn, bound_attn)
    b = jax.random.uniform(k_b, (attn_dim,), jnp.float32,
                           -bound_attn, bound_attn)
    bound_v = 1.0 / jnp.sqrt(attn_dim)
    v = jax.random.uniform(k_v, (attn_dim,), jnp.float32, -bound_v, bound_v)

    ref = _reference(decoder_hidden, encoder_outputs, W, b, v)

    # f32 path: must match the PyTorch module to 1e-5.
    out = attention_forward(decoder_hidden, encoder_outputs, W, b, v)
    out = jax.block_until_ready(out)
    assert out.shape == (B, S)
    assert jnp.allclose(out, ref, atol=1e-5, rtol=1e-5), "mismatch vs reference (f32)"
    assert jnp.allclose(jnp.sum(out, axis=1), jnp.ones((B,)), atol=1e-5)

    # bf16 encoder path (halved HBM traffic): looser tolerance, rows still sum to 1.
    out_bf16 = attention_forward(decoder_hidden, encoder_outputs, W, b, v,
                                 encoder_in_bf16=True)
    out_bf16 = jax.block_until_ready(out_bf16)
    assert jnp.allclose(out_bf16, ref, atol=2e-2, rtol=2e-2), "mismatch vs reference (bf16)"
    assert jnp.allclose(jnp.sum(out_bf16, axis=1), jnp.ones((B,)), atol=1e-5)

    print("KERNEL_OK")
</pallas_src>

<mosaic_0001>
module attributes {stable_mosaic.version = 11 : i64} {
  func.func @attention_kernel(%arg0: i32, %arg1: memref<8x32xf32, #tpu.memory_space<vmem>>, %arg2: memref<16x8x32xf32, #tpu.memory_space<vmem>>, %arg3: memref<32x24xf32, #tpu.memory_space<vmem>>, %arg4: memref<32x24xf32, #tpu.memory_space<vmem>>, %arg5: memref<1x24xf32, #tpu.memory_space<vmem>>, %arg6: memref<1x24xf32, #tpu.memory_space<vmem>>, %arg7: memref<8x16xf32, #tpu.memory_space<vmem>>) attributes {dimension_semantics = [#tpu.dimension_semantics<parallel>], iteration_bounds = array<i64: 2>, scalar_prefetch = 0 : i64, scratch_operands = 0 : i64, tpu.core_type = #tpu.core_type<tc>, window_params = [{transform_indices = @transform_0, window_bounds = array<i64: 8, 32>}, {transform_indices = @transform_1, window_bounds = array<i64: 16, 8, 32>}, {pipeline_mode = #tpu.pipeline_mode<synchronous>, transform_indices = @transform_2, window_bounds = array<i64: 32, 24>}, {pipeline_mode = #tpu.pipeline_mode<synchronous>, transform_indices = @transform_3, window_bounds = array<i64: 32, 24>}, {pipeline_mode = #tpu.pipeline_mode<synchronous>, transform_indices = @transform_4, window_bounds = array<i64: 1, 24>}, {pipeline_mode = #tpu.pipeline_mode<synchronous>, transform_indices = @transform_5, window_bounds = array<i64: 1, 24>}, {transform_indices = @transform_6, window_bounds = array<i64: 8, 16>}]} {
    %c0 = arith.constant 0 : index
    %c0_0 = arith.constant 0 : index
    %0 = vector.load %arg1[%c0, %c0_0] : memref<8x32xf32, #tpu.memory_space<vmem>>, vector<8x32xf32>
    %c0_1 = arith.constant 0 : index
    %c0_2 = arith.constant 0 : index
    %1 = vector.load %arg3[%c0_1, %c0_2] : memref<32x24xf32, #tpu.memory_space<vmem>>, vector<32x24xf32>
    %cst = arith.constant dense<0.000000e+00> : vector<8x24xf32>
    %2 = tpu.matmul %0, %1, %cst {dimension_numbers = #tpu.dot_dimension_numbers<[1], [0], [0], [1], [0, 0, 1, 1], [], []>} : vector<8x32xf32>, vector<32x24xf32>, vector<8x24xf32> -> vector<8x24xf32>
    %c0_3 = arith.constant 0 : index
    %c0_4 = arith.constant 0 : index
    %3 = vector.load %arg5[%c0_3, %c0_4] : memref<1x24xf32, #tpu.memory_space<vmem>>, vector<1x24xf32>
    %4 = vector.broadcast %3 : vector<1x24xf32> to vector<8x24xf32>
    %5 = arith.addf %2, %4 : vector<8x24xf32>
    %c0_5 = arith.constant 0 : index
    %c0_6 = arith.constant 0 : index
    %c0_7 = arith.constant 0 : index
    %6 = vector.load %arg2[%c0_5, %c0_6, %c0_7] : memref<16x8x32xf32, #tpu.memory_space<vmem>>, vector<16x8x32xf32>
    %7 = vector.shape_cast %6 : vector<16x8x32xf32> to vector<128x32xf32>
    %c0_8 = arith.constant 0 : index
    %c0_9 = arith.constant 0 : index
    %8 = vector.load %arg4[%c0_8, %c0_9] : memref<32x24xf32, #tpu.memory_space<vmem>>, vector<32x24xf32>
    %cst_10 = arith.constant dense<0.000000e+00> : vector<128x24xf32>
    %9 = tpu.matmul %7, %8, %cst_10 {dimension_numbers = #tpu.dot_dimension_numbers<[1], [0], [0], [1], [0, 0, 1, 1], [], []>} : vector<128x32xf32>, vector<32x24xf32>, vector<128x24xf32> -> vector<128x24xf32>
    %10 = vector.shape_cast %9 : vector<128x24xf32> to vector<16x8x24xf32>
    %11 = vector.shape_cast %5 : vector<8x24xf32> to vector<1x8x24xf32>
    %12 = vector.broadcast %11 : vector<1x8x24xf32> to vector<16x8x24xf32>
    %13 = arith.addf %10, %12 : vector<16x8x24xf32>
    %14 = math.tanh %13 : vector<16x8x24xf32>
    %c0_11 = arith.constant 0 : index
    %c0_12 = arith.constant 0 : index
    %15 = vector.load %arg6[%c0_11, %c0_12] : memref<1x24xf32, #tpu.memory_space<vmem>>, vector<1x24xf32>
    %16 = vector.shape_cast %15 : vector<1x24xf32> to vector<1x1x24xf32>
    %17 = vector.broadcast %16 : vector<1x1x24xf32> to vector<16x8x24xf32>
    %18 = arith.mulf %14, %17 : vector<16x8x24xf32>
    %cst_13 = arith.constant dense<0.000000e+00> : vector<16x8xf32>
    %19 = vector.multi_reduction <add>, %18, %cst_13 [2] : vector<16x8x24xf32> to vector<16x8xf32>
    %20 = tpu.transpose %19, [1, 0] : vector<16x8xf32> -> vector<8x16xf32>
    %cst_14 = arith.constant dense<0xFF800000> : vector<8xf32>
    %21 = vector.multi_reduction <maximumf>, %20, %cst_14 [1] : vector<8x16xf32> to vector<8xf32>
    %22 = vector.shape_cast %21 : vector<8xf32> to vector<8x1xf32>
    %23 = vector.broadcast %22 : vector<8x1xf32> to vector<8x16xf32>
    %24 = arith.subf %20, %23 : vector<8x16xf32>
    %25 = math.exp %24 : vector<8x16xf32>
    %cst_15 = arith.constant dense<0.000000e+00> : vector<8xf32>
    %26 = vector.multi_reduction <add>, %25, %cst_15 [1] : vector<8x16xf32> to vector<8xf32>
    %27 = vector.shape_cast %26 : vector<8xf32> to vector<8x1xf32>
    %28 = tpu.reciprocal %27 {approx = true} : vector<8x1xf32> -> vector<8x1xf32>
    %29 = arith.mulf %27, %28 : vector<8x1xf32>
    %cst_16 = arith.constant 2.000000e+00 : f32
    %30 = vector.broadcast %cst_16 : f32 to vector<8x1xf32>
    %31 = arith.subf %30, %29 : vector<8x1xf32>
    %32 = arith.mulf %28, %31 : vector<8x1xf32>
    %33 = vector.broadcast %32 : vector<8x1xf32> to vector<8x16xf32>
    %34 = arith.mulf %25, %33 : vector<8x16xf32>
    %c0_17 = arith.constant 0 : index
    %c0_18 = arith.constant 0 : index
    %35 = vector.load %arg7[%c0_17, %c0_18] : memref<8x16xf32, #tpu.memory_space<vmem>>, vector<8x16xf32>
    tpu.vector_store %arg7[%c0_17, %c0_18], %34 {strides = array<i32>} : memref<8x16xf32, #tpu.memory_space<vmem>>, vector<8x16xf32>,
    return
  }
  func.func @transform_0(%arg0: i32) -> (i32, i32) {
    %c0_i32 = arith.constant 0 : i32
    %c0_i32_0 = arith.constant 0 : i32
    return %arg0, %c0_i32 : i32, i32
  }
  func.func @transform_1(%arg0: i32) -> (i32, i32, i32) {
    %c0_i32 = arith.constant 0 : i32
    %c0_i32_0 = arith.constant 0 : i32
    %c0_i32_1 = arith.constant 0 : i32
    return %c0_i32, %arg0, %c0_i32_0 : i32, i32, i32
  }
  func.func @transform_2(%arg0: i32) -> (i32, i32) {
    %c0_i32 = arith.constant 0 : i32
    %c0_i32_0 = arith.constant 0 : i32
    %c0_i32_1 = arith.constant 0 : i32
    return %c0_i32, %c0_i32_0 : i32, i32
  }
  func.func @transform_3(%arg0: i32) -> (i32, i32) {
    %c0_i32 = arith.constant 0 : i32
    %c0_i32_0 = arith.constant 0 : i32
    %c0_i32_1 = arith.constant 0 : i32
    return %c0_i32, %c0_i32_0 : i32, i32
  }
  func.func @transform_4(%arg0: i32) -> (i32, i32) {
    %c0_i32 = arith.constant 0 : i32
    %c0_i32_0 = arith.constant 0 : i32
    %c0_i32_1 = arith.constant 0 : i32
    return %c0_i32, %c0_i32_0 : i32, i32
  }
  func.func @transform_5(%arg0: i32) -> (i32, i32) {
    %c0_i32 = arith.constant 0 : i32
    %c0_i32_0 = arith.constant 0 : i32
    %c0_i32_1 = arith.constant 0 : i32
    return %c0_i32, %c0_i32_0 : i32, i32
  }
  func.func @transform_6(%arg0: i32) -> (i32, i32) {
    %c0_i32 = arith.constant 0 : i32
    %c0_i32_0 = arith.constant 0 : i32
    return %arg0, %c0_i32 : i32, i32
  }
}

module attributes {stable_mosaic.version = 11 : i64} {
  func.func @attention_kernel(%arg0: i32, %arg1: memref<8x32xf32, #tpu.memory_space<vmem>>, %arg2: memref<16x8x32xf32, #tpu.memory_space<vmem>>, %arg3: memref<32x24xf32, #tpu.memory_space<vmem>>, %arg4: memref<32x24xf32, #tpu.memory_space<vmem>>, %arg5: memref<1x24xf32, #tpu.memory_space<vmem>>, %arg6: memref<1x24xf32, #tpu.memory_space<vmem>>, %arg7: memref<8x16xf32, #tpu.memory_space<vmem>>) attributes {dimension_semantics = [#tpu.dimension_semantics<parallel>], iteration_bounds = array<i64: 2>, scalar_prefetch = 0 : i64, scratch_operands = 0 : i64, tpu.core_type = #tpu.core_type<tc>, window_params = [{transform_indices = @transform_0, window_bounds = array<i64: 8, 32>}, {transform_indices = @transform_1, window_bounds = array<i64: 16, 8, 32>}, {pipeline_mode = #tpu.pipeline_mode<synchronous>, transform_indices = @transform_2, window_bounds = array<i64: 32, 24>}, {pipeline_mode = #tpu.pipeline_mode<synchronous>, transform_indices = @transform_3, window_bounds = array<i64: 32, 24>}, {pipeline_mode = #tpu.pipeline_mode<synchronous>, transform_indices = @transform_4, window_bounds = array<i64: 1, 24>}, {pipeline_mode = #tpu.pipeline_mode<synchronous>, transform_indices = @transform_5, window_bounds = array<i64: 1, 24>}, {transform_indices = @transform_6, window_bounds = array<i64: 8, 16>}]} {
    %c0 = arith.constant 0 : index
    %c0_0 = arith.constant 0 : index
    %0 = vector.load %arg1[%c0, %c0_0] : memref<8x32xf32, #tpu.memory_space<vmem>>, vector<8x32xf32>
    %c0_1 = arith.constant 0 : index
    %c0_2 = arith.constant 0 : index
    %1 = vector.load %arg3[%c0_1, %c0_2] : memref<32x24xf32, #tpu.memory_space<vmem>>, vector<32x24xf32>
    %cst = arith.constant dense<0.000000e+00> : vector<8x24xf32>
    %2 = tpu.matmul %0, %1, %cst {dimension_numbers = #tpu.dot_dimension_numbers<[1], [0], [0], [1], [0, 0, 1, 1], [], []>} : vector<8x32xf32>, vector<32x24xf32>, vector<8x24xf32> -> vector<8x24xf32>
    %c0_3 = arith.constant 0 : index
    %c0_4 = arith.constant 0 : index
    %3 = vector.load %arg5[%c0_3, %c0_4] : memref<1x24xf32, #tpu.memory_space<vmem>>, vector<1x24xf32>
    %4 = vector.broadcast %3 : vector<1x24xf32> to vector<8x24xf32>
    %5 = arith.addf %2, %4 : vector<8x24xf32>
    %c0_5 = arith.constant 0 : index
    %c0_6 = arith.constant 0 : index
    %c0_7 = arith.constant 0 : index
    %6 = vector.load %arg2[%c0_5, %c0_6, %c0_7] : memref<16x8x32xf32, #tpu.memory_space<vmem>>, vector<16x8x32xf32>
    %7 = vector.shape_cast %6 : vector<16x8x32xf32> to vector<128x32xf32>
    %c0_8 = arith.constant 0 : index
    %c0_9 = arith.constant 0 : index
    %8 = vector.load %arg4[%c0_8, %c0_9] : memref<32x24xf32, #tpu.memory_space<vmem>>, vector<32x24xf32>
    %cst_10 = arith.constant dense<0.000000e+00> : vector<128x24xf32>
    %9 = tpu.matmul %7, %8, %cst_10 {dimension_numbers = #tpu.dot_dimension_numbers<[1], [0], [0], [1], [0, 0, 1, 1], [], []>} : vector<128x32xf32>, vector<32x24xf32>, vector<128x24xf32> -> vector<128x24xf32>
    %10 = vector.shape_cast %9 : vector<128x24xf32> to vector<16x8x24xf32>
    %11 = vector.shape_cast %5 : vector<8x24xf32> to vector<1x8x24xf32>
    %12 = vector.broadcast %11 : vector<1x8x24xf32> to vector<16x8x24xf32>
    %13 = arith.addf %10, %12 : vector<16x8x24xf32>
    %14 = math.tanh %13 : vector<16x8x24xf32>
    %c0_11 = arith.constant 0 : index
    %c0_12 = arith.constant 0 : index
    %15 = vector.load %arg6[%c0_11, %c0_12] : memref<1x24xf32, #tpu.memory_space<vmem>>, vector<1x24xf32>
    %16 = vector.shape_cast %15 : vector<1x24xf32> to vector<1x1x24xf32>
    %17 = vector.broadcast %16 : vector<1x1x24xf32> to vector<16x8x24xf32>
    %18 = arith.mulf %14, %17 : vector<16x8x24xf32>
    %cst_13 = arith.constant dense<0.000000e+00> : vector<16x8xf32>
    %19 = vector.multi_reduction <add>, %18, %cst_13 [2] : vector<16x8x24xf32> to vector<16x8xf32>
    %20 = tpu.transpose %19, [1, 0] : vector<16x8xf32> -> vector<8x16xf32>
    %cst_14 = arith.constant dense<0xFF800000> : vector<8xf32>
    %21 = vector.multi_reduction <maximumf>, %20, %cst_14 [1] : vector<8x16xf32> to vector<8xf32>
    %22 = vector.shape_cast %21 : vector<8xf32> to vector<8x1xf32>
    %23 = vector.broadcast %22 : vector<8x1xf32> to vector<8x16xf32>
    %24 = arith.subf %20, %23 : vector<8x16xf32>
    %25 = math.exp %24 : vector<8x16xf32>
    %cst_15 = arith.constant dense<0.000000e+00> : vector<8xf32>
    %26 = vector.multi_reduction <add>, %25, %cst_15 [1] : vector<8x16xf32> to vector<8xf32>
    %27 = vector.shape_cast %26 : vector<8xf32> to vector<8x1xf32>
    %28 = tpu.reciprocal %27 {approx = true} : vector<8x1xf32> -> vector<8x1xf32>
    %29 = arith.mulf %27, %28 : vector<8x1xf32>
    %cst_16 = arith.constant 2.000000e+00 : f32
    %30 = vector.broadcast %cst_16 : f32 to vector<8x1xf32>
    %31 = arith.subf %30, %29 : vector<8x1xf32>
    %32 = arith.mulf %28, %31 : vector<8x1xf32>
    %33 = vector.broadcast %32 : vector<8x1xf32> to vector<8x16xf32>
    %34 = arith.mulf %25, %33 : vector<8x16xf32>
    %c0_17 = arith.constant 0 : index
    %c0_18 = arith.constant 0 : index
    %35 = vector.load %arg7[%c0_17, %c0_18] : memref<8x16xf32, #tpu.memory_space<vmem>>, vector<8x16xf32>
    tpu.vector_store %arg7[%c0_17, %c0_18], %34 {strides = array<i32>} : memref<8x16xf32, #tpu.memory_space<vmem>>, vector<8x16xf32>,
    return
  }
  func.func @transform_0(%arg0: i32) -> (i32, i32) {
    %c0_i32 = arith.constant 0 : i32
    %c0_i32_0 = arith.constant 0 : i32
    return %arg0, %c0_i32 : i32, i32
  }
  func.func @transform_1(%arg0: i32) -> (i32, i32, i32) {
    %c0_i32 = arith.constant 0 : i32
    %c0_i32_0 = arith.constant 0 : i32
    %c0_i32_1 = arith.constant 0 : i32
    return %c0_i32, %arg0, %c0_i32_0 : i32, i32, i32
  }
  func.func @transform_2(%arg0: i32) -> (i32, i32) {
    %c0_i32 = arith.constant 0 : i32
    %c0_i32_0 = arith.constant 0 : i32
    %c0_i32_1 = arith.constant 0 : i32
    return %c0_i32, %c0_i32_0 : i32, i32
  }
  func.func @transform_3(%arg0: i32) -> (i32, i32) {
    %c0_i32 = arith.constant 0 : i32
    %c0_i32_0 = arith.constant 0 : i32
    %c0_i32_1 = arith.constant 0 : i32
    return %c0_i32, %c0_i32_0 : i32, i32
  }
  func.func @transform_4(%arg0: i32) -> (i32, i32) {
    %c0_i32 = arith.constant 0 : i32
    %c0_i32_0 = arith.constant 0 : i32
    %c0_i32_1 = arith.constant 0 : i32
    return %c0_i32, %c0_i32_0 : i32, i32
  }
  func.func @transform_5(%arg0: i32) -> (i32, i32) {
    %c0_i32 = arith.constant 0 : i32
    %c0_i32_0 = arith.constant 0 : i32
    %c0_i32_1 = arith.constant 0 : i32
    return %c0_i32, %c0_i32_0 : i32, i32
  }
  func.func @transform_6(%arg0: i32) -> (i32, i32) {
    %c0_i32 = arith.constant 0 : i32
    %c0_i32_0 = arith.constant 0 : i32
    return %arg0, %c0_i32 : i32, i32
  }
}

</mosaic_0001>

<llo_original>
// kernel: tpu_custom_call.1
$region0: #{tpu_custom_call.1}
  #allocation0 [shape = 'u32[]', space=smem, size = 0x4, offset = 0x4, fixed_abs, tag = 'smem constant byte address 0x4 - core index']
  #allocation1 [shape = 'u32[144,128]{1,0:T(1,128)}', space=vmem, size = 0x12000, scoped, tag = 'internal scratch']
  %s0 = inlined_call_operand.vmem [shape: f32[16,32], index: 0, kind: input, shape index: {}]
  %s1 = inlined_call_operand.hbm [shape: f32[16,16,32], index: 1, kind: input, shape index: {}]
  %s2 = inlined_call_operand.vmem [shape: f32[32,24], index: 2, kind: input, shape index: {}]
  %s3 = inlined_call_operand.vmem [shape: f32[32,24], index: 3, kind: input, shape index: {}]
  %s4 = inlined_call_operand.vmem [shape: f32[1,24], index: 4, kind: input, shape index: {}]
  %s5 = inlined_call_operand.vmem [shape: f32[1,24], index: 5, kind: input, shape index: {}]
  %s6 = inlined_call_operand.hbm [shape: f32[16,16], index: 6, kind: output, shape index: {}]
  %s7 = sld [smem:[#allocation0]]
  $region61: #{tpu_custom_call.1} parent=0
    _
  %s9 = ssub.s32 1, %s7
  %s10 = scalar_select 0, %s9, %s7
  $region1: #{tpu_custom_call.1} parent=0
    #allocation2 [shape = 'u8[131072]{0}', space=vmem, size = 0x20000, scoped, tag = 'input window, operand 1']
    #allocation3 [shape = 's32[2]{0}', space=sflag, size = 0x8, scoped, tag = 'scoped memory for tpu_custom_call.1']
    #allocation4 [shape = 's32[2]{0}', space=sflag, size = 0x8, scoped, tag = 'scoped memory for tpu_custom_call.1']
    #allocation5 [shape = 'u8[8192]{0}', space=vmem, size = 0x2000, scoped, tag = 'output window, operand 0']
    %11 = vsyncpa [#allocation3], 0
    %s12 = scalar_lea.sflag [#allocation3], 1
    %13 = vsyncpa %s12, 0
    %14 = vsyncpa [#allocation4], 0
    %s15 = scalar_lea.sflag [#allocation4], 1
    %16 = vsyncpa %s15, 0
    loop: start=0, step=1, limit=4
    $region2: #{tpu_custom_call.1} parent=1 // loop_pre_header
      _
    $region3: #{tpu_custom_call.1} parent=1 // loop_header
      %s18 = sphi 0, %s22
      %p19 = scmp.ge.s32.totalorder %s18, 4
      %s28 = sphi 0, %s30
      %s31 = sphi 0, %s28
      %s32 = sphi 0, %s31
      %s48 = sphi 0, %s32
      %s54 = sphi 0, %s56
      %s57 = sphi 0, %s54
      %s58 = sphi 0, %s57
      %s74 = sphi 0, %s58
      %s78 = sphi 0, %s78
      %s80 = sphi 0, %s78
      %s81 = sphi 0, %s80
      %s95 = sphi 0, %s81
      %s99 = sphi 0, %s99
      %s101 = sphi 0, %s99
      %s102 = sphi 0, %s101
      %s116 = sphi 0, %s102
      %s120 = sphi 0, %s120
      %s122 = sphi 0, %s120
      %s123 = sphi 0, %s122
      %s137 = sphi 0, %s123
      %s141 = sphi 0, %s141
      %s143 = sphi 0, %s141
      %s144 = sphi 0, %s143
      %s158 = sphi 0, %s144
      %s164 = sphi 0, %s166
      %s167 = sphi 0, %s164
      %s168 = sphi 0, %s167
      %s184 = sphi 0, %s168
    $region4: #{tpu_custom_call.1} parent=1 // loop_header_branch
      %21 = sbr.rel (%p19) target = $region8
    $region5: #{tpu_custom_call.1} parent=1 // loop_body
      %s23 = ssub.s32 %s18, 1
      %s24 = ssub.s32 %s18, 2
      %s25 = sadd.s32 %s18, 1
      %s26 = ssub.s32 %s18, %s25
      %p27 = scmp.eq.s32.totalorder %s26, 0
      %s29 = sadd.s32 %s28, 1
      %s30 = scalar_select %p27, %s28, %s29
      %p33 = pneg %p27
      %p34 = scmp.eq.s32.totalorder %s18, 1
      %p35 = por %p33, %p34
      %p36 = scmp.ne.s32.totalorder %s28, %s31
      %p37 = scmp.eq.s32.totalorder %s18, 0
      %p38 = por %p36, %p37
      %p39 = scmp.ne.s32.totalorder %s28, %s31
      %p40 = scmp.eq.s32.totalorder %s23, 1
      %p41 = por %p39, %p40
      %p42 = scmp.ne.s32.totalorder %s31, %s32
      %p43 = scmp.eq.s32.totalorder %s23, 0
      %p44 = por %p42, %p43
      %p45 = scmp.ne.s32.totalorder %s31, %s32
      %p46 = scmp.eq.s32.totalorder %s24, 1
      %p47 = por %p45, %p46
      %p49 = scmp.ne.s32.totalorder %s32, %s48
      %p50 = scmp.eq.s32.totalorder %s24, 0
      %p51 = por %p49, %p50
      %s52 = ssub.s32 %s18, %s25
      %p53 = scmp.eq.s32.totalorder %s52, 0
      %s55 = sadd.s32 %s54, 1
      %s56 = scalar_select %p53, %s54, %s55
      %p59 = pneg %p53
      %p60 = scmp.eq.s32.totalorder %s18, 1
      %p61 = por %p59, %p60
      %p62 = scmp.ne.s32.totalorder %s54, %s57
      %p63 = scmp.eq.s32.totalorder %s18, 0
      %p64 = por %p62, %p63
      %p65 = scmp.ne.s32.totalorder %s54, %s57
      %p66 = scmp.eq.s32.totalorder %s23, 1
      %p67 = por %p65, %p66
      %p68 = scmp.ne.s32.totalorder %s57, %s58
      %p69 = scmp.eq.s32.totalorder %s23, 0
      %p70 = por %p68, %p69
      %p71 = scmp.ne.s32.totalorder %s57, %s58
      %p72 = scmp.eq.s32.totalorder %s24, 1
      %p73 = por %p71, %p72
      %p75 = scmp.ne.s32.totalorder %s58, %s74
      %p76 = scmp.eq.s32.totalorder %s24, 0
      %p77 = por %p75, %p76
      %s79 = sadd.s32 %s78, 1
      %p82 = scmp.eq.s32.totalorder %s18, 1
      %p83 = scmp.ne.s32.totalorder %s78, %s80
      %p84 = scmp.eq.s32.totalorder %s18, 0
      %p85 = por %p83, %p84
      %p86 = scmp.ne.s32.totalorder %s78, %s80
      %p87 = scmp.eq.s32.totalorder %s23, 1
      %p88 = por %p86, %p87
      %p89 = scmp.ne.s32.totalorder %s80, %s81
      %p90 = scmp.eq.s32.totalorder %s23, 0
      %p91 = por %p89, %p90
      %p92 = scmp.ne.s32.totalorder %s80, %s81
      %p93 = scmp.eq.s32.totalorder %s24, 1
      %p94 = por %p92, %p93
      %p96 = scmp.ne.s32.totalorder %s81, %s95
      %p97 = scmp.eq.s32.totalorder %s24, 0
      %p98 = por %p96, %p97
      %s100 = sadd.s32 %s99, 1
      %p103 = scmp.eq.s32.totalorder %s18, 1
      %p104 = scmp.ne.s32.totalorder %s99, %s101
      %p105 = scmp.eq.s32.totalorder %s18, 0
      %p106 = por %p104, %p105
      %p107 = scmp.ne.s32.totalorder %s99, %s101
      %p108 = scmp.eq.s32.totalorder %s23, 1
      %p109 = por %p107, %p108
      %p110 = scmp.ne.s32.totalorder %s101, %s102
      %p111 = scmp.eq.s32.totalorder %s23, 0
      %p112 = por %p110, %p111
      %p113 = scmp.ne.s32.totalorder %s101, %s102
      %p114 = scmp.eq.s32.totalorder %s24, 1
      %p115 = por %p113, %p114
      %p117 = scmp.ne.s32.totalorder %s102, %s116
      %p118 = scmp.eq.s32.totalorder %s24, 0
      %p119 = por %p117, %p118
      %s121 = sadd.s32 %s120, 1
      %p124 = scmp.eq.s32.totalorder %s18, 1
      %p125 = scmp.ne.s32.totalorder %s120, %s122
      %p126 = scmp.eq.s32.totalorder %s18, 0
      %p127 = por %p125, %p126
      %p128 = scmp.ne.s32.totalorder %s120, %s122
      %p129 = scmp.eq.s32.totalorder %s23, 1
      %p130 = por %p128, %p129
      %p131 = scmp.ne.s32.totalorder %s122, %s123
      %p132 = scmp.eq.s32.totalorder %s23, 0
      %p133 = por %p131, %p132
      %p134 = scmp.ne.s32.totalorder %s122, %s123
      %p135 = scmp.eq.s32.totalorder %s24, 1
      %p136 = por %p134, %p135
      %p138 = scmp.ne.s32.totalorder %s123, %s137
      %p139 = scmp.eq.s32.totalorder %s24, 0
      %p140 = por %p138, %p139
      %s142 = sadd.s32 %s141, 1
      %p145 = scmp.eq.s32.totalorder %s18, 1
      %p146 = scmp.ne.s32.totalorder %s141, %s143
      %p147 = scmp.eq.s32.totalorder %s18, 0
      %p148 = por %p146, %p147
      %p149 = scmp.ne.s32.totalorder %s141, %s143
      %p150 = scmp.eq.s32.totalorder %s23, 1
      %p151 = por %p149, %p150
      %p152 = scmp.ne.s32.totalorder %s143, %s144
      %p153 = scmp.eq.s32.totalorder %s23, 0
      %p154 = por %p152, %p153
      %p155 = scmp.ne.s32.totalorder %s143, %s144
      %p156 = scmp.eq.s32.totalorder %s24, 1
      %p157 = por %p155, %p156
      %p159 = scmp.ne.s32.totalorder %s144, %s158
      %p160 = scmp.eq.s32.totalorder %s24, 0
      %p161 = por %p159, %p160
      %s162 = ssub.s32 %s18, %s25
      %p163 = scmp.eq.s32.totalorder %s162, 0
      %s165 = sadd.s32 %s164, 1
      %s166 = scalar_select %p163, %s164, %s165
      %p169 = pneg %p163
      %p170 = scmp.eq.s32.totalorder %s18, 1
      %p171 = por %p169, %p170
      %p172 = scmp.ne.s32.totalorder %s164, %s167
      %p173 = scmp.eq.s32.totalorder %s18, 0
      %p174 = por %p172, %p173
      %p175 = scmp.ne.s32.totalorder %s164, %s167
      %p176 = scmp.eq.s32.totalorder %s23, 1
      %p177 = por %p175, %p176
      %p178 = scmp.ne.s32.totalorder %s167, %s168
      %p179 = scmp.eq.s32.totalorder %s23, 0
      %p180 = por %p178, %p179
      %p181 = scmp.ne.s32.totalorder %s167, %s168
      %p182 = scmp.eq.s32.totalorder %s24, 1
      %p183 = por %p181, %p182
      %p185 = scmp.ne.s32.totalorder %s168, %s184
      %p186 = scmp.eq.s32.totalorder %s24, 0
      %p187 = por %p185, %p186
      %p188 = scmp.le.s32.totalorder 1, %s18
      %p189 = scmp.lt.s32.totalorder %s18, 3
      %p190 = pnand %p188, %p189
      %p191 = pneg %p190
      // Predicated region
      $region9: #{tpu_custom_call.1} parent=5 // pred_check
        _
      $region10: #{tpu_custom_call.1} parent=5 // pred_check_branch
        %193 = sbr.rel (%p190) target = $region12
      $region11: #{tpu_custom_call.1} parent=5 // pred_region
        %s194 = ssub.s32 %s18, 1
        // Predicated region
        $region13: #{tpu_custom_call.1} parent=11 // pred_check
          %p195 = pneg %p91
        $region14: #{tpu_custom_call.1} parent=11 // pred_check_branch
          %197 = sbr.rel (%p195) target = $region16
        $region15: #{tpu_custom_call.1} parent=11 // pred_region
          _
        $region16: #{tpu_custom_call.1} parent=11 // pred_fallthru
          _
        // Predicated region
        $region17: #{tpu_custom_call.1} parent=11 // pred_check
          %p198 = pneg %p112
        $region18: #{tpu_custom_call.1} parent=11 // pred_check_branch
          %200 = sbr.rel (%p198) target = $region20
        $region19: #{tpu_custom_call.1} parent=11 // pred_region
          _
        $region20: #{tpu_custom_call.1} parent=11 // pred_fallthru
          _
        // Predicated region
        $region21: #{tpu_custom_call.1} parent=11 // pred_check
          %p201 = pneg %p133
        $region22: #{tpu_custom_call.1} parent=11 // pred_check_branch
          %203 = sbr.rel (%p201) target = $region24
        $region23: #{tpu_custom_call.1} parent=11 // pred_region
          _
        $region24: #{tpu_custom_call.1} parent=11 // pred_fallthru
          _
        // Predicated region
        $region25: #{tpu_custom_call.1} parent=11 // pred_check
          %p204 = pneg %p154
        $region26: #{tpu_custom_call.1} parent=11 // pred_check_branch
          %206 = sbr.rel (%p204) target = $region28
        $region27: #{tpu_custom_call.1} parent=11 // pred_region
          _
        $region28: #{tpu_custom_call.1} parent=11 // pred_fallthru
          _
      $region12: #{tpu_custom_call.1} parent=5 // pred_fallthru
        _
      %p207 = scmp.lt.s32.totalorder %s18, 2
      // Predicated region
      $region29: #{tpu_custom_call.1} parent=5 // pred_check
        %p208 = pneg %p207
      $region30: #{tpu_custom_call.1} parent=5 // pred_check_branch
        %210 = sbr.rel (%p208) target = $region32
      $region31: #{tpu_custom_call.1} parent=5 // pred_region
        // Predicated region
        $region33: #{tpu_custom_call.1} parent=31 // pred_check
          %p211 = pneg %p38
        $region34: #{tpu_custom_call.1} parent=31 // pred_check_branch
          %213 = sbr.rel (%p211) target = $region36
        $region35: #{tpu_custom_call.1} parent=31 // pred_region
          %p214 = scmp.lt.s32.totalorder %s18, 1
          %s215 = scalar_select %p214, %s18, 1
          %s216 = smul.addr %s215, 8
          %s217 = scalar_lea.vmem %s0, %s216
        $region36: #{tpu_custom_call.1} parent=31 // pred_fallthru
          _
        // Predicated region
        $region37: #{tpu_custom_call.1} parent=31 // pred_check
          %p218 = pneg %p64
        $region38: #{tpu_custom_call.1} parent=31 // pred_check_branch
          %220 = sbr.rel (%p218) target = $region40
        $region39: #{tpu_custom_call.1} parent=31 // pred_region
          %s221 = sand.u32 %s54, 1
          %s222 = scalar_lea.sflag [#allocation3], %s221
          %s223 = sand.u32 %s54, 1
          %s224 = smul.addr %s223, 128
          %s225 = scalar_lea.vmem [#allocation2], %s224
          %s227 = ssub.s32 2048, 2048
          %228 = vsyncadd %s222, %s227
          %s229 = smul.addr %s18, 128
          %s230 = scalar_lea.hbm %s1, %s229
          %s231 = sshll.u32 %s225, 4
          %s232 = int_to_ptr.vmem [resolvable:$true] %s231
          %237 = dma.hbm_to_vmem [thread:$0]  %s230, 2048, %s232, %s222, 256, 128, 8
        $region40: #{tpu_custom_call.1} parent=31 // pred_fallthru
          _
      $region32: #{tpu_custom_call.1} parent=5 // pred_fallthru
        _
      %p238 = scmp.le.s32.totalorder 1, %s18
      %p239 = scmp.lt.s32.totalorder %s18, 3
      %p240 = pnand %p238, %p239
      %p241 = pneg %p240
      // Predicated region
      $region41: #{tpu_custom_call.1} parent=5 // pred_check
        _
      $region42: #{tpu_custom_call.1} parent=5 // pred_check_branch
        %243 = sbr.rel (%p240) target = $region44
      $region43: #{tpu_custom_call.1} parent=5 // pred_region
        %s244 = ssub.s32 %s18, 1
        %s245 = sand.u32 %s57, 1
        %s246 = scalar_lea.sflag [#allocation3], %s245
        %s247 = sand.u32 %s57, 1
        %s248 = smul.addr %s247, 128
        %s249 = scalar_lea.vmem [#allocation2], %s248
        // Predicated region
        $region45: #{tpu_custom_call.1} parent=43 // pred_check
          %p250 = pneg %p70
        $region46: #{tpu_custom_call.1} parent=43 // pred_check_branch
          %252 = sbr.rel (%p250) target = $region48
        $region47: #{tpu_custom_call.1} parent=43 // pred_region
          %253 = dma.done %s246, 2048
        $region48: #{tpu_custom_call.1} parent=43 // pred_fallthru
          _
        %p254 = scmp.lt.s32.totalorder %s23, 1
        %s255 = scalar_select %p254, %s23, 1
        %s256 = smul.addr %s255, 8
        %s257 = scalar_lea.vmem %s0, %s256
        %p258 = pneg %p44
        %p259 = pneg %p41
        %s260 = sand.u32 %s57, 1
        %s261 = scalar_lea.sflag [#allocation3], %s260
        %s262 = sand.u32 %s57, 1
        %s263 = smul.addr %s262, 128
        %s264 = scalar_lea.vmem [#allocation2], %s263
        %p265 = pneg %p70
        %p266 = pneg %p67
        %p267 = pneg %p91
        %p268 = pneg %p88
        %p269 = pneg %p112
        %p270 = pneg %p109
        %p271 = pneg %p133
        %p272 = pneg %p130
        %p273 = pneg %p154
        %p274 = pneg %p151
        %p275 = pneg %p180
        %p276 = pneg %p177
        %s277 = sand.u32 %s167, 1
        %s278 = scalar_lea.sflag [#allocation4], %s277
        %s279 = sand.u32 %s167, 1
        %s280 = smul.addr %s279, 8
        %s281 = scalar_lea.vmem [#allocation5], %s280
        %p282 = scmp.lt.s32.totalorder %s23, 1
        %s283 = scalar_select %p282, %s23, 1
        %s284 = smul.addr %s283, 8
        %s285 = scalar_lea.vmem %s0, %s284
        %v286 = vld [vmem:[%s285] sm:$0xff]
        %v287 = vld [vmem:[%s2] sm:$0xff]
        %v288 = vld [vmem:[%s2 + $0x8] sm:$0xff]
        %v289 = vld [vmem:[%s2 + $0x10] sm:$0xff]
        %v290 = vld [vmem:[%s2 + $0x18] sm:$0xff]
        %v291 = vld [vmem:[%s4] sm:$0x1]
        %v293 = vlaneseq
        %v294 = vshrl.u32 %v293, 7
        %v295 = vsub.s32 0, %v294
        %v296 = vrot.slane %v291, %v295
        %vm298 = vcmask 261120
        %v300 = vsel %vm298, %v286, 0
        %302 = vmatprep.subr.mxu0 0.0
        %303 = vmatpush1.msra.mxu0 %v287
        %304 = vmatprep.subr.mxu0 0.0
        %305 = vmatpush1.msra.mxu0 %v288
        %306 = vmatprep.subr.mxu0 0.0
        %307 = vmatpush1.msra.mxu0 %v289
        %308 = vmatprep.subr.mxu0 0.0
        %309 = vmatpush1.msra.mxu0 %v290
        %310 = vmatprep.subr.mxu0 0.0
        %311 = vmatpush1.msra.mxu0 0.0
        %312 = vmatprep.subr.mxu0 0.0
        %313 = vmatpush1.msra.mxu0 0.0
        %314 = vmatprep.subr.mxu0 0.0
        %315 = vmatpush1.msra.mxu0 0.0
        %316 = vmatprep.subr.mxu0 0.0
        %317 = vmatpush1.msra.mxu0 0.0
        %318 = vmatprep.subr.mxu0 0.0
        %319 = vmatpush1.msra.mxu0 0.0
        %320 = vmatprep.subr.mxu0 0.0
        %321 = vmatpush1.msra.mxu0 0.0
        %322 = vmatprep.subr.mxu0 0.0
        %323 = vmatpush1.msra.mxu0 0.0
        %324 = vmatprep.subr.mxu0 0.0
        %325 = vmatpush1.msra.mxu0 0.0
        %326 = vmatprep.subr.mxu0 0.0
        %327 = vmatpush1.msra.mxu0 0.0
        %328 = vmatprep.subr.mxu0 0.0
        %329 = vmatpush1.msra.mxu0 0.0
        %330 = vmatprep.subr.mxu0 0.0
        %331 = vmatpush1.msra.mxu0 0.0
        %332 = vmatprep.subr.mxu0 0.0
        %333 = vmatpush1.msra.mxu0 0.0
        %334 = vmatprep.subr.mxu0 0.0
        %335 = vmatpush1.msra.mxu0 0.0
        %336 = vmatprep.subr.mxu0 0.0
        %337 = vmatpush1.msra.mxu0 0.0
        %338 = vmatprep.subr.mxu0 0.0
        %339 = vmatpush1.msra.mxu0 0.0
        %340 = vmatprep.subr.mxu0 0.0
        %341 = vmatpush1.msra.mxu0 0.0
        %342 = vmatprep.subr.mxu0 0.0
        %343 = vmatpush1.msra.mxu0 0.0
        %344 = vmatprep.subr.mxu0 0.0
        %345 = vmatpush1.msra.mxu0 0.0
        %346 = vmatprep.subr.mxu0 0.0
        %347 = vmatpush1.msra.mxu0 0.0
        %348 = vmatprep.subr.mxu0 0.0
        %349 = vmatpush1.msra.mxu0 0.0
        %350 = vmatprep.subr.mxu0 0.0
        %351 = vmatpush1.msra.mxu0 0.0
        %352 = vmatprep.subr.mxu0 0.0
        %353 = vmatpush1.msra.mxu0 0.0
        %354 = vmatprep.subr.mxu0 0.0
        %355 = vmatpush1.msra.mxu0 0.0
        %356 = vmatprep.subr.mxu0 0.0
        %357 = vmatpush1.msra.mxu0 0.0
        %358 = vmatprep.subr.mxu0 0.0
        %359 = vmatpush1.msra.mxu0 0.0
        %360 = vmatprep.subr.mxu0 0.0
        %361 = vmatpush1.msra.mxu0 0.0
        %362 = vmatprep.subr.mxu0 0.0
        %363 = vmatpush1.msra.mxu0 0.0
        %364 = vmatprep.subr.mxu0 0.0
        %365 = vmatpush1.msra.mxu0 0.0
        %366 = vmatprep.mubr.f32.mxu0 0.0
        %367 = vmatmul.mubr.f32.gmra.mrb[0].mxu0 %v300
        %v368 = vpop.f32.mrb[0].mxu0
        %v369 = vadd.f32 %v296, %v368
        %v370 = vpop.f32.mrb[0].mxu0
        %371 = vdwg.mxu0
        %v372 = vld [vmem:[%s249] sm:$0xff]
        %v373 = vld [vmem:[%s249 + $0x8] sm:$0xff]
        %v374 = vld [vmem:[%s249 + $0x10] sm:$0xff]
        %v375 = vld [vmem:[%s249 + $0x18] sm:$0xff]
        %v376 = vld [vmem:[%s249 + $0x20] sm:$0xff]
        %v377 = vld [vmem:[%s249 + $0x28] sm:$0xff]
        %v378 = vld [vmem:[%s249 + $0x30] sm:$0xff]
        %v379 = vld [vmem:[%s249 + $0x38] sm:$0xff]
        %v380 = vld [vmem:[%s249 + $0x40] sm:$0xff]
        %v381 = vld [vmem:[%s249 + $0x48] sm:$0xff]
        %v382 = vld [vmem:[%s249 + $0x50] sm:$0xff]
        %v383 = vld [vmem:[%s249 + $0x58] sm:$0xff]
        %v384 = vld [vmem:[%s249 + $0x60] sm:$0xff]
        %v385 = vld [vmem:[%s249 + $0x68] sm:$0xff]
        %v386 = vld [vmem:[%s249 + $0x70] sm:$0xff]
        %v387 = vld [vmem:[%s249 + $0x78] sm:$0xff]
        %v388 = vld [vmem:[%s3] sm:$0xff]
        %v389 = vld [vmem:[%s3 + $0x8] sm:$0xff]
        %v390 = vld [vmem:[%s3 + $0x10] sm:$0xff]
        %v391 = vld [vmem:[%s3 + $0x18] sm:$0xff]
        %v393 = vsel %vm298, %v372, 0
        %v396 = vsel %vm298, %v373, 0
        %v399 = vsel %vm298, %v374, 0
        %v402 = vsel %vm298, %v375, 0
        %v405 = vsel %vm298, %v376, 0
        %v408 = vsel %vm298, %v377, 0
        %v411 = vsel %vm298, %v378, 0
        %v414 = vsel %vm298, %v379, 0
        %v417 = vsel %vm298, %v380, 0
        %v420 = vsel %vm298, %v381, 0
        %v423 = vsel %vm298, %v382, 0
        %v426 = vsel %vm298, %v383, 0
        %v429 = vsel %vm298, %v384, 0
        %v432 = vsel %vm298, %v385, 0
        %v435 = vsel %vm298, %v386, 0
        %v438 = vsel %vm298, %v387, 0
        %440 = vmatprep.subr.mxu0 0.0
        %441 = vmatpush1.msra.mxu0 %v388
        %442 = vmatprep.subr.mxu0 0.0
        %443 = vmatpush1.msra.mxu0 %v389
        %444 = vmatprep.subr.mxu0 0.0
        %445 = vmatpush1.msra.mxu0 %v390
        %446 = vmatprep.subr.mxu0 0.0
        %447 = vmatpush1.msra.mxu0 %v391
        %448 = vmatprep.subr.mxu0 0.0
        %449 = vmatpush1.msra.mxu0 0.0
        %450 = vmatprep.subr.mxu0 0.0
        %451 = vmatpush1.msra.mxu0 0.0
        %452 = vmatprep.subr.mxu0 0.0
        %453 = vmatpush1.msra.mxu0 0.0
        %454 = vmatprep.subr.mxu0 0.0
        %455 = vmatpush1.msra.mxu0 0.0
        %456 = vmatprep.subr.mxu0 0.0
        %457 = vmatpush1.msra.mxu0 0.0
        %458 = vmatprep.subr.mxu0 0.0
        %459 = vmatpush1.msra.mxu0 0.0
        %460 = vmatprep.subr.mxu0 0.0
        %461 = vmatpush1.msra.mxu0 0.0
        %462 = vmatprep.subr.mxu0 0.0
        %463 = vmatpush1.msra.mxu0 0.0
        %464 = vmatprep.subr.mxu0 0.0
        %465 = vmatpush1.msra.mxu0 0.0
        %466 = vmatprep.subr.mxu0 0.0
        %467 = vmatpush1.msra.mxu0 0.0
        %468 = vmatprep.subr.mxu0 0.0
        %469 = vmatpush1.msra.mxu0 0.0
        %470 = vmatprep.subr.mxu0 0.0
        %471 = vmatpush1.msra.mxu0 0.0
        %472 = vmatprep.subr.mxu0 0.0
        %473 = vmatpush1.msra.mxu0 0.0
        %474 = vmatprep.subr.mxu0 0.0
        %475 = vmatpush1.msra.mxu0 0.0
        %476 = vmatprep.subr.mxu0 0.0
        %477 = vmatpush1.msra.mxu0 0.0
        %478 = vmatprep.subr.mxu0 0.0
        %479 = vmatpush1.msra.mxu0 0.0
        %480 = vmatprep.subr.mxu0 0.0
        %481 = vmatpush1.msra.mxu0 0.0
        %482 = vmatprep.subr.mxu0 0.0
        %483 = vmatpush1.msra.mxu0 0.0
        %484 = vmatprep.subr.mxu0 0.0
        %485 = vmatpush1.msra.mxu0 0.0
        %486 = vmatprep.subr.mxu0 0.0
        %487 = vmatpush1.msra.mxu0 0.0
        %488 = vmatprep.subr.mxu0 0.0
        %489 = vmatpush1.msra.mxu0 0.0
        %490 = vmatprep.subr.mxu0 0.0
        %491 = vmatpush1.msra.mxu0 0.0
        %492 = vmatprep.subr.mxu0 0.0
        %493 = vmatpush1.msra.mxu0 0.0
        %494 = vmatprep.subr.mxu0 0.0
        %495 = vmatpush1.msra.mxu0 0.0
        %496 = vmatprep.subr.mxu0 0.0
        %497 = vmatpush1.msra.mxu0 0.0
        %498 = vmatprep.subr.mxu0 0.0
        %499 = vmatpush1.msra.mxu0 0.0
        %500 = vmatprep.subr.mxu0 0.0
        %501 = vmatpush1.msra.mxu0 0.0
        %502 = vmatprep.subr.mxu0 0.0
        %503 = vmatpush1.msra.mxu0 0.0
        %504 = vmatprep.mubr.f32.mxu0 0.0
        %505 = vmatmul.mubr.f32.gmra.mrb[0].mxu0 %v393
        %v506 = vpop.f32.mrb[0].mxu0
        %v507 = vadd.f32 0.0, %v506
        %v508 = vpop.f32.mrb[0].mxu0
        %509 = vmatprep.mubr.f32.mxu0 0.0
        %510 = vmatmul.mubr.f32.gmra.mrb[0].mxu0 %v396
        %v511 = vpop.f32.mrb[0].mxu0
        %v512 = vadd.f32 0.0, %v511
        %v513 = vpop.f32.mrb[0].mxu0
        %514 = vmatprep.mubr.f32.mxu0 0.0
        %515 = vmatmul.mubr.f32.gmra.mrb[0].mxu0 %v399
        %v516 = vpop.f32.mrb[0].mxu0
        %v517 = vadd.f32 0.0, %v516
        %v518 = vpop.f32.mrb[0].mxu0
        %519 = vmatprep.mubr.f32.mxu0 0.0
        %520 = vmatmul.mubr.f32.gmra.mrb[0].mxu0 %v402
        %v521 = vpop.f32.mrb[0].mxu0
        %v522 = vadd.f32 0.0, %v521
        %v523 = vpop.f32.mrb[0].mxu0
        %524 = vmatprep.mubr.f32.mxu0 0.0
        %525 = vmatmul.mubr.f32.gmra.mrb[0].mxu0 %v405
        %v526 = vpop.f32.mrb[0].mxu0
        %v527 = vadd.f32 0.0, %v526
        %v528 = vpop.f32.mrb[0].mxu0
        %529 = vmatprep.mubr.f32.mxu0 0.0
        %530 = vmatmul.mubr.f32.gmra.mrb[0].mxu0 %v408
        %v531 = vpop.f32.mrb[0].mxu0
        %v532 = vadd.f32 0.0, %v531
        %v533 = vpop.f32.mrb[0].mxu0
        %534 = vmatprep.mubr.f32.mxu0 0.0
        %535 = vmatmul.mubr.f32.gmra.mrb[0].mxu0 %v411
        %v536 = vpop.f32.mrb[0].mxu0
        %v537 = vadd.f32 0.0, %v536
        %v538 = vpop.f32.mrb[0].mxu0
        %539 = vmatprep.mubr.f32.mxu0 0.0
        %540 = vmatmul.mubr.f32.gmra.mrb[0].mxu0 %v414
        %v541 = vpop.f32.mrb[0].mxu0
        %v542 = vadd.f32 0.0, %v541
        %v543 = vpop.f32.mrb[0].mxu0
        %544 = vmatprep.mubr.f32.mxu0 0.0
        %545 = vmatmul.mubr.f32.gmra.mrb[0].mxu0 %v417
        %v546 = vpop.f32.mrb[0].mxu0
        %v547 = vadd.f32 0.0, %v546
        %v548 = vpop.f32.mrb[0].mxu0
        %549 = vmatprep.mubr.f32.mxu0 0.0
        %550 = vmatmul.mubr.f32.gmra.mrb[0].mxu0 %v420
        %v551 = vpop.f32.mrb[0].mxu0
        %v552 = vadd.f32 0.0, %v551
        %v553 = vpop.f32.mrb[0].mxu0
        %554 = vmatprep.mubr.f32.mxu0 0.0
        %555 = vmatmul.mubr.f32.gmra.mrb[0].mxu0 %v423
        %v556 = vpop.f32.mrb[0].mxu0
        %v557 = vadd.f32 0.0, %v556
        %v558 = vpop.f32.mrb[0].mxu0
        %559 = vmatprep.mubr.f32.mxu0 0.0
        %560 = vmatmul.mubr.f32.gmra.mrb[0].mxu0 %v426
        %v561 = vpop.f32.mrb[0].mxu0
        %v562 = vadd.f32 0.0, %v561
        %v563 = vpop.f32.mrb[0].mxu0
        %564 = vmatprep.mubr.f32.mxu0 0.0
        %565 = vmatmul.mubr.f32.gmra.mrb[0].mxu0 %v429
        %v566 = vpop.f32.mrb[0].mxu0
        %v567 = vadd.f32 0.0, %v566
        %v568 = vpop.f32.mrb[0].mxu0
        %569 = vmatprep.mubr.f32.mxu0 0.0
        %570 = vmatmul.mubr.f32.gmra.mrb[0].mxu0 %v432
        %v571 = vpop.f32.mrb[0].mxu0
        %v572 = vadd.f32 0.0, %v571
        %v573 = vpop.f32.mrb[0].mxu0
        %574 = vmatprep.mubr.f32.mxu0 0.0
        %575 = vmatmul.mubr.f32.gmra.mrb[0].mxu0 %v435
        %v576 = vpop.f32.mrb[0].mxu0
        %v577 = vadd.f32 0.0, %v576
        %v578 = vpop.f32.mrb[0].mxu0
        %579 = vmatprep.mubr.f32.mxu0 0.0
        %580 = vmatmul.mubr.f32.gmra.mrb[0].mxu0 %v438
        %v581 = vpop.f32.mrb[0].mxu0
        %v582 = vadd.f32 0.0, %v581
        %v583 = vpop.f32.mrb[0].mxu0
        %584 = vdwg.mxu0
        %v585 = vadd.f32 %v507, %v369
        %v586 = vadd.f32 %v512, %v369
        %v587 = vadd.f32 %v517, %v369
        %v588 = vadd.f32 %v522, %v369
        %v589 = vadd.f32 %v527, %v369
        %v590 = vadd.f32 %v532, %v369
        %v591 = vadd.f32 %v537, %v369
        %v592 = vadd.f32 %v542, %v369
        %v593 = vadd.f32 %v547, %v369
        %v594 = vadd.f32 %v552, %v369
        %v595 = vadd.f32 %v557, %v369
        %v596 = vadd.f32 %v562, %v369
        %v597 = vadd.f32 %v567, %v369
        %v598 = vadd.f32 %v572, %v369
        %v599 = vadd.f32 %v577, %v369
        %v600 = vadd.f32 %v582, %v369
        %v601 = vtanh.pop %v585
        %v602 = vtanh.pop %v586
        %v603 = vtanh.pop %v587
        %v604 = vtanh.pop %v588
        %v605 = vtanh.pop %v589
        %v606 = vtanh.pop %v590
        %v607 = vtanh.pop %v591
        %v608 = vtanh.pop %v592
        %v609 = vtanh.pop %v593
        %v610 = vtanh.pop %v594
        %v611 = vtanh.pop %v595
        %v612 = vtanh.pop %v596
        %v613 = vtanh.pop %v597
        %v614 = vtanh.pop %v598
        %v615 = vtanh.pop %v599
        %v616 = vtanh.pop %v600
        %v617 = vld [vmem:[%s5] sm:$0x1]
        %v619 = vlaneseq
        %v620 = vshrl.u32 %v619, 7
        %v621 = vsub.s32 0, %v620
        %v622 = vrot.slane %v617, %v621
        %v624 = vmul.f32 %v601, %v622
        %v625 = vmul.f32 %v602, %v622
        %v626 = vmul.f32 %v603, %v622
        %v627 = vmul.f32 %v604, %v622
        %v628 = vmul.f32 %v605, %v622
        %v629 = vmul.f32 %v606, %v622
        %v630 = vmul.f32 %v607, %v622
        %v631 = vmul.f32 %v608, %v622
        %v632 = vmul.f32 %v609, %v622
        %v633 = vmul.f32 %v610, %v622
        %v634 = vmul.f32 %v611, %v622
        %v635 = vmul.f32 %v612, %v622
        %v636 = vmul.f32 %v613, %v622
        %v637 = vmul.f32 %v614, %v622
        %v638 = vmul.f32 %v615, %v622
        %v639 = vmul.f32 %v616, %v622
        %vm640 = vcmask 195584
        %v641 = vsel %vm640, %v624, 0.0
        %642 = vadd.xlane.f32.xlu0 %v641
        %v643 = vpop.xlane.xlu0 %642
        %v644 = vsel %vm640, %v625, 0.0
        %645 = vadd.xlane.f32.xlu0 %v644
        %v646 = vpop.xlane.xlu0 %645
        %v647 = vsel %vm640, %v626, 0.0
        %648 = vadd.xlane.f32.xlu0 %v647
        %v649 = vpop.xlane.xlu0 %648
        %v650 = vsel %vm640, %v627, 0.0
        %651 = vadd.xlane.f32.xlu0 %v650
        %v652 = vpop.xlane.xlu0 %651
        %v653 = vsel %vm640, %v628, 0.0
        %654 = vadd.xlane.f32.xlu0 %v653
        %v655 = vpop.xlane.xlu0 %654
        %v656 = vsel %vm640, %v629, 0.0
        %657 = vadd.xlane.f32.xlu0 %v656
        %v658 = vpop.xlane.xlu0 %657
        %v659 = vsel %vm640, %v630, 0.0
        %660 = vadd.xlane.f32.xlu0 %v659
        %v661 = vpop.xlane.xlu0 %660
        %v662 = vsel %vm640, %v631, 0.0
        %663 = vadd.xlane.f32.xlu0 %v662
        %v664 = vpop.xlane.xlu0 %663
        %v665 = vsel %vm640, %v632, 0.0
        %666 = vadd.xlane.f32.xlu0 %v665
        %v667 = vpop.xlane.xlu0 %666
        %v668 = vsel %vm640, %v633, 0.0
        %669 = vadd.xlane.f32.xlu0 %v668
        %v670 = vpop.xlane.xlu0 %669
        %v671 = vsel %vm640, %v634, 0.0
        %672 = vadd.xlane.f32.xlu0 %v671
        %v673 = vpop.xlane.xlu0 %672
        %v674 = vsel %vm640, %v635, 0.0
        %675 = vadd.xlane.f32.xlu0 %v674
        %v676 = vpop.xlane.xlu0 %675
        %v677 = vsel %vm640, %v636, 0.0
        %678 = vadd.xlane.f32.xlu0 %v677
        %v679 = vpop.xlane.xlu0 %678
        %v680 = vsel %vm640, %v637, 0.0
        %681 = vadd.xlane.f32.xlu0 %v680
        %v682 = vpop.xlane.xlu0 %681
        %v683 = vsel %vm640, %v638, 0.0
        %684 = vadd.xlane.f32.xlu0 %v683
        %v685 = vpop.xlane.xlu0 %684
        %v686 = vsel %vm640, %v639, 0.0
        %687 = vadd.xlane.f32.xlu0 %v686
        %v688 = vpop.xlane.xlu0 %687
        %v705 = vlaneseq
        %v706 = vand.u32 %v705, 127
        %v707 = vlaneseq
        %v708 = vshrl.u32 %v707, 7
        %v709 = vsub.s32 %v706, %v708
        %v710 = vrot.slane %v643, %v709
        %v711 = vlaneseq
        %v712 = vshrl.u32 %v711, 7
        %v713 = vsub.s32 %v706, %v712
        %v714 = vrot.slane %v646, %v713
        %v715 = vlaneseq
        %v716 = vshrl.u32 %v715, 7
        %v717 = vsub.s32 %v706, %v716
        %v718 = vrot.slane %v649, %v717
        %v719 = vlaneseq
        %v720 = vshrl.u32 %v719, 7
        %v721 = vsub.s32 %v706, %v720
        %v722 = vrot.slane %v652, %v721
        %v723 = vlaneseq
        %v724 = vshrl.u32 %v723, 7
        %v725 = vsub.s32 %v706, %v724
        %v726 = vrot.slane %v655, %v725
        %v727 = vlaneseq
        %v728 = vshrl.u32 %v727, 7
        %v729 = vsub.s32 %v706, %v728
        %v730 = vrot.slane %v658, %v729
        %v731 = vlaneseq
        %v732 = vshrl.u32 %v731, 7
        %v733 = vsub.s32 %v706, %v732
        %v734 = vrot.slane %v661, %v733
        %v735 = vlaneseq
        %v736 = vshrl.u32 %v735, 7
        %v737 = vsub.s32 %v706, %v736
        %v738 = vrot.slane %v664, %v737
        %v739 = vlaneseq
        %v740 = vshrl.u32 %v739, 7
        %v741 = vsub.s32 %v706, %v740
        %v742 = vrot.slane %v667, %v741
        %v743 = vlaneseq
        %v744 = vshrl.u32 %v743, 7
        %v745 = vsub.s32 %v706, %v744
        %v746 = vrot.slane %v670, %v745
        %v747 = vlaneseq
        %v748 = vshrl.u32 %v747, 7
        %v749 = vsub.s32 %v706, %v748
        %v750 = vrot.slane %v673, %v749
        %v751 = vlaneseq
        %v752 = vshrl.u32 %v751, 7
        %v753 = vsub.s32 %v706, %v752
        %v754 = vrot.slane %v676, %v753
        %v755 = vlaneseq
        %v756 = vshrl.u32 %v755, 7
        %v757 = vsub.s32 %v706, %v756
        %v758 = vrot.slane %v679, %v757
        %v759 = vlaneseq
        %v760 = vshrl.u32 %v759, 7
        %v761 = vsub.s32 %v706, %v760
        %v762 = vrot.slane %v682, %v761
        %v763 = vlaneseq
        %v764 = vshrl.u32 %v763, 7
        %v765 = vsub.s32 %v706, %v764
        %v766 = vrot.slane %v685, %v765
        %v767 = vlaneseq
        %v768 = vshrl.u32 %v767, 7
        %v769 = vsub.s32 %v706, %v768
        %v770 = vrot.slane %v688, %v769
        %vm771 = vcmask 1041409
        %v772 = vsel %vm771, %v714, %v710
        %vm773 = vcmask 1042434
        %v774 = vsel %vm773, %v718, %v772
        %vm775 = vcmask 1043459
        %v776 = vsel %vm775, %v722, %v774
        %vm777 = vcmask 1044484
        %v778 = vsel %vm777, %v726, %v776
        %vm779 = vcmask 1045509
        %v780 = vsel %vm779, %v730, %v778
        %vm781 = vcmask 1046534
        %v782 = vsel %vm781, %v734, %v780
        %vm783 = vcmask 1047559
        %v784 = vsel %vm783, %v738, %v782
        %v785 = vsel %vm771, %v746, %v742
        %v786 = vsel %vm773, %v750, %v785
        %v787 = vsel %vm775, %v754, %v786
        %v788 = vsel %vm777, %v758, %v787
        %v789 = vsel %vm779, %v762, %v788
        %v790 = vsel %vm781, %v766, %v789
        %v791 = vsel %vm783, %v770, %v790
        %794 = vxpose.xlu0.b32.start [1/16] %v784, 128
        %795 = vxpose.xlu0.b32.cont [2/16] %v791, 128
        %796 = vxpose.xlu0.b32.cont [3/16] 0.0, 128
        %797 = vxpose.xlu0.b32.cont [4/16] 0.0, 128
        %798 = vxpose.xlu0.b32.cont [5/16] 0.0, 128
        %799 = vxpose.xlu0.b32.cont [6/16] 0.0, 128
        %800 = vxpose.xlu0.b32.cont [7/16] 0.0, 128
        %801 = vxpose.xlu0.b32.cont [8/16] 0.0, 128
        %802 = vxpose.xlu0.b32.cont [9/16] 0.0, 128
        %803 = vxpose.xlu0.b32.cont [10/16] 0.0, 128
        %804 = vxpose.xlu0.b32.cont [11/16] 0.0, 128
        %805 = vxpose.xlu0.b32.cont [12/16] 0.0, 128
        %806 = vxpose.xlu0.b32.cont [13/16] 0.0, 128
        %807 = vxpose.xlu0.b32.cont [14/16] 0.0, 128
        %808 = vxpose.xlu0.b32.cont [15/16] 0.0, 128
        %809 = vxpose.xlu0.b32.end [16/16] 0.0, 128
        %v810 = vpop.trf.xlu0
        %v811 = vpop.trf.xlu0
        %v812 = vpop.trf.xlu0
        %v813 = vpop.trf.xlu0
        %v814 = vpop.trf.xlu0
        %v815 = vpop.trf.xlu0
        %v816 = vpop.trf.xlu0
        %v817 = vpop.trf.xlu0
        %v818 = vpop.trf.xlu0
        %v819 = vpop.trf.xlu0
        %v820 = vpop.trf.xlu0
        %v821 = vpop.trf.xlu0
        %v822 = vpop.trf.xlu0
        %v823 = vpop.trf.xlu0
        %v824 = vpop.trf.xlu0
        %v825 = vpop.trf.xlu0
        %vm826 = vcmask 130048
        %v827 = vsel %vm826, %v810, -inf
        %828 = vmax.xlane.f32.xlu0 %v827
        %v829 = vpop.xlane.xlu0 %828
        %v830 = vsub.f32 %v810, %v829
        %v831 = vmul.f32 %v830, 1.442695
        %v832 = vpow.pop %v831
        %v833 = vsel %vm826, %v832, 0.0
        %834 = vadd.xlane.f32.xlu0 %v833
        %v835 = vpop.xlane.xlu0 %834
        %v836 = vrcp.pop %v835
        %v837 = vmul.f32 %v835, %v836
        %v838 = vsub.f32 2.0, %v837
        %v839 = vmul.f32 %v836, %v838
        %v840 = vmul.f32 %v832, %v839
        %841 = vst.msk [vmem:[%s281] sm:$0xff] %vm826, %v840
        %s842 = sand.u32 %s167, 1
        %s843 = scalar_lea.sflag [#allocation4], %s842
        %s844 = sand.u32 %s167, 1
        %s845 = smul.addr %s844, 8
        %s846 = scalar_lea.vmem [#allocation5], %s845
        // Predicated region
        $region49: #{tpu_custom_call.1} parent=43 // pred_check
          %p847 = pneg %p177
        $region50: #{tpu_custom_call.1} parent=43 // pred_check_branch
          %849 = sbr.rel (%p847) target = $region52
        $region51: #{tpu_custom_call.1} parent=43 // pred_region
          %s851 = ssub.s32 128, 128
          %852 = vsyncadd %s843, %s851
          %s853 = smul.addr %s23, 128
          %s854 = scalar_lea.hbm %s6, %s853
          %s856 = sshll.u32 %s846, 4
          %s857 = int_to_ptr.vmem [resolvable:$true] %s856
          %859 = dma.vmem_to_hbm [thread:$0]  %s857, 128, %s854, %s843
        $region52: #{tpu_custom_call.1} parent=43 // pred_fallthru
          _
      $region44: #{tpu_custom_call.1} parent=5 // pred_fallthru
        _
      %p860 = scmp.le.s32.totalorder 2, %s18
      // Predicated region
      $region53: #{tpu_custom_call.1} parent=5 // pred_check
        %p861 = pneg %p860
      $region54: #{tpu_custom_call.1} parent=5 // pred_check_branch
        %863 = sbr.rel (%p861) target = $region56
      $region55: #{tpu_custom_call.1} parent=5 // pred_region
        %s864 = ssub.s32 %s18, 2
        // Predicated region
        $region57: #{tpu_custom_call.1} parent=55 // pred_check
          %p865 = pneg %p183
        $region58: #{tpu_custom_call.1} parent=55 // pred_check_branch
          %867 = sbr.rel (%p865) target = $region60
        $region59: #{tpu_custom_call.1} parent=55 // pred_region
          %s868 = sand.u32 %s168, 1
          %s869 = scalar_lea.sflag [#allocation4], %s868
          %s870 = sand.u32 %s168, 1
          %s871 = smul.addr %s870, 8
          %s872 = scalar_lea.vmem [#allocation5], %s871
          %873 = dma.done %s869, 128
        $region60: #{tpu_custom_call.1} parent=55 // pred_fallthru
          _
      $region56: #{tpu_custom_call.1} parent=5 // pred_fallthru
        _
    $region6: #{tpu_custom_call.1} parent=1 // loop_footer
      %s22 = sadd.s32 1, %s18
    $region7: #{tpu_custom_call.1} parent=1 // loop_footer_branch
      %17 = sbr.rel target = $region3
    $region8: #{tpu_custom_call.1} parent=1 // loop_exit
      _
    %874 = vsyncpa [#allocation3], 1
    %s875 = scalar_lea.sflag [#allocation3], 1
    %876 = vsyncpa %s875, 1
    %877 = vsyncpa [#allocation4], 1
    %s878 = scalar_lea.sflag [#allocation4], 1
    %879 = vsyncpa %s878, 1

// kernel: tpu_custom_call.1
$region0: #{tpu_custom_call.1}
  #allocation0 [shape = 'u32[]', space=smem, size = 0x4, offset = 0x4, fixed_abs, tag = 'smem constant byte address 0x4 - core index']
  #allocation1 [shape = 'u32[144,128]{1,0:T(1,128)}', space=vmem, size = 0x12000, scoped, tag = 'internal scratch']
  %s0 = inlined_call_operand.vmem [shape: f32[16,32], index: 0, kind: input, shape index: {}]
  %s1 = inlined_call_operand.hbm [shape: f32[16,16,32], index: 1, kind: input, shape index: {}]
  %s2 = inlined_call_operand.vmem [shape: f32[32,24], index: 2, kind: input, shape index: {}]
  %s3 = inlined_call_operand.vmem [shape: f32[32,24], index: 3, kind: input, shape index: {}]
  %s4 = inlined_call_operand.vmem [shape: f32[1,24], index: 4, kind: input, shape index: {}]
  %s5 = inlined_call_operand.vmem [shape: f32[1,24], index: 5, kind: input, shape index: {}]
  %s6 = inlined_call_operand.hbm [shape: f32[16,16], index: 6, kind: output, shape index: {}]
  %s7 = sld [smem:[#allocation0]]
  $region61: #{tpu_custom_call.1} parent=0
    _
  %s9 = ssub.s32 1, %s7
  %s10 = scalar_select 0, %s9, %s7
  $region1: #{tpu_custom_call.1} parent=0
    #allocation2 [shape = 'u8[131072]{0}', space=vmem, size = 0x20000, scoped, tag = 'input window, operand 1']
    #allocation3 [shape = 's32[2]{0}', space=sflag, size = 0x8, scoped, tag = 'scoped memory for tpu_custom_call.1']
    #allocation4 [shape = 's32[2]{0}', space=sflag, size = 0x8, scoped, tag = 'scoped memory for tpu_custom_call.1']
    #allocation5 [shape = 'u8[8192]{0}', space=vmem, size = 0x2000, scoped, tag = 'output window, operand 0']
    %11 = vsyncpa [#allocation3], 0
    %s12 = scalar_lea.sflag [#allocation3], 1
    %13 = vsyncpa %s12, 0
    %14 = vsyncpa [#allocation4], 0
    %s15 = scalar_lea.sflag [#allocation4], 1
    %16 = vsyncpa %s15, 0
    loop: start=0, step=1, limit=4
    $region2: #{tpu_custom_call.1} parent=1 // loop_pre_header
      _
    $region3: #{tpu_custom_call.1} parent=1 // loop_header
      %s18 = sphi 0, %s22
      %p19 = scmp.ge.s32.totalorder %s18, 4
      %s28 = sphi 0, %s30
      %s31 = sphi 0, %s28
      %s32 = sphi 0, %s31
      %s48 = sphi 0, %s32
      %s54 = sphi 0, %s56
      %s57 = sphi 0, %s54
      %s58 = sphi 0, %s57
      %s74 = sphi 0, %s58
      %s78 = sphi 0, %s78
      %s80 = sphi 0, %s78
      %s81 = sphi 0, %s80
      %s95 = sphi 0, %s81
      %s99 = sphi 0, %s99
      %s101 = sphi 0, %s99
      %s102 = sphi 0, %s101
      %s116 = sphi 0, %s102
      %s120 = sphi 0, %s120
      %s122 = sphi 0, %s120
      %s123 = sphi 0, %s122
      %s137 = sphi 0, %s123
      %s141 = sphi 0, %s141
      %s143 = sphi 0, %s141
      %s144 = sphi 0, %s143
      %s158 = sphi 0, %s144
      %s164 = sphi 0, %s166
      %s167 = sphi 0, %s164
      %s168 = sphi 0, %s167
      %s184 = sphi 0, %s168
    $region4: #{tpu_custom_call.1} parent=1 // loop_header_branch
      %21 = sbr.rel (%p19) target = $region8
    $region5: #{tpu_custom_call.1} parent=1 // loop_body
      %s23 = ssub.s32 %s18, 1
      %s24 = ssub.s32 %s18, 2
      %s25 = sadd.s32 %s18, 1
      %s26 = ssub.s32 %s18, %s25
      %p27 = scmp.eq.s32.totalorder %s26, 0
      %s29 = sadd.s32 %s28, 1
      %s30 = scalar_select %p27, %s28, %s29
      %p33 = pneg %p27
      %p34 = scmp.eq.s32.totalorder %s18, 1
      %p35 = por %p33, %p34
      %p36 = scmp.ne.s32.totalorder %s28, %s31
      %p37 = scmp.eq.s32.totalorder %s18, 0
      %p38 = por %p36, %p37
      %p39 = scmp.ne.s32.totalorder %s28, %s31
      %p40 = scmp.eq.s32.totalorder %s23, 1
      %p41 = por %p39, %p40
      %p42 = scmp.ne.s32.totalorder %s31, %s32
      %p43 = scmp.eq.s32.totalorder %s23, 0
      %p44 = por %p42, %p43
      %p45 = scmp.ne.s32.totalorder %s31, %s32
      %p46 = scmp.eq.s32.totalorder %s24, 1
      %p47 = por %p45, %p46
      %p49 = scmp.ne.s32.totalorder %s32, %s48
      %p50 = scmp.eq.s32.totalorder %s24, 0
      %p51 = por %p49, %p50
      %s52 = ssub.s32 %s18, %s25
      %p53 = scmp.eq.s32.totalorder %s52, 0
      %s55 = sadd.s32 %s54, 1
      %s56 = scalar_select %p53, %s54, %s55
      %p59 = pneg %p53
      %p60 = scmp.eq.s32.totalorder %s18, 1
      %p61 = por %p59, %p60
      %p62 = scmp.ne.s32.totalorder %s54, %s57
      %p63 = scmp.eq.s32.totalorder %s18, 0
      %p64 = por %p62, %p63
      %p65 = scmp.ne.s32.totalorder %s54, %s57
      %p66 = scmp.eq.s32.totalorder %s23, 1
      %p67 = por %p65, %p66
      %p68 = scmp.ne.s32.totalorder %s57, %s58
      %p69 = scmp.eq.s32.totalorder %s23, 0
      %p70 = por %p68, %p69
      %p71 = scmp.ne.s32.totalorder %s57, %s58
      %p72 = scmp.eq.s32.totalorder %s24, 1
      %p73 = por %p71, %p72
      %p75 = scmp.ne.s32.totalorder %s58, %s74
      %p76 = scmp.eq.s32.totalorder %s24, 0
      %p77 = por %p75, %p76
      %s79 = sadd.s32 %s78, 1
      %p82 = scmp.eq.s32.totalorder %s18, 1
      %p83 = scmp.ne.s32.totalorder %s78, %s80
      %p84 = scmp.eq.s32.totalorder %s18, 0
      %p85 = por %p83, %p84
      %p86 = scmp.ne.s32.totalorder %s78, %s80
      %p87 = scmp.eq.s32.totalorder %s23, 1
      %p88 = por %p86, %p87
      %p89 = scmp.ne.s32.totalorder %s80, %s81
      %p90 = scmp.eq.s32.totalorder %s23, 0
      %p91 = por %p89, %p90
      %p92 = scmp.ne.s32.totalorder %s80, %s81
      %p93 = scmp.eq.s32.totalorder %s24, 1
      %p94 = por %p92, %p93
      %p96 = scmp.ne.s32.totalorder %s81, %s95
      %p97 = scmp.eq.s32.totalorder %s24, 0
      %p98 = por %p96, %p97
      %s100 = sadd.s32 %s99, 1
      %p103 = scmp.eq.s32.totalorder %s18, 1
      %p104 = scmp.ne.s32.totalorder %s99, %s101
      %p105 = scmp.eq.s32.totalorder %s18, 0
      %p106 = por %p104, %p105
      %p107 = scmp.ne.s32.totalorder %s99, %s101
      %p108 = scmp.eq.s32.totalorder %s23, 1
      %p109 = por %p107, %p108
      %p110 = scmp.ne.s32.totalorder %s101, %s102
      %p111 = scmp.eq.s32.totalorder %s23, 0
      %p112 = por %p110, %p111
      %p113 = scmp.ne.s32.totalorder %s101, %s102
      %p114 = scmp.eq.s32.totalorder %s24, 1
      %p115 = por %p113, %p114
      %p117 = scmp.ne.s32.totalorder %s102, %s116
      %p118 = scmp.eq.s32.totalorder %s24, 0
      %p119 = por %p117, %p118
      %s121 = sadd.s32 %s120, 1
      %p124 = scmp.eq.s32.totalorder %s18, 1
      %p125 = scmp.ne.s32.totalorder %s120, %s122
      %p126 = scmp.eq.s32.totalorder %s18, 0
      %p127 = por %p125, %p126
      %p128 = scmp.ne.s32.totalorder %s120, %s122
      %p129 = scmp.eq.s32.totalorder %s23, 1
      %p130 = por %p128, %p129
      %p131 = scmp.ne.s32.totalorder %s122, %s123
      %p132 = scmp.eq.s32.totalorder %s23, 0
      %p133 = por %p131, %p132
      %p134 = scmp.ne.s32.totalorder %s122, %s123
      %p135 = scmp.eq.s32.totalorder %s24, 1
      %p136 = por %p134, %p135
      %p138 = scmp.ne.s32.totalorder %s123, %s137
      %p139 = scmp.eq.s32.totalorder %s24, 0
      %p140 = por %p138, %p139
      %s142 = sadd.s32 %s141, 1
      %p145 = scmp.eq.s32.totalorder %s18, 1
      %p146 = scmp.ne.s32.totalorder %s141, %s143
      %p147 = scmp.eq.s32.totalorder %s18, 0
      %p148 = por %p146, %p147
      %p149 = scmp.ne.s32.totalorder %s141, %s143
      %p150 = scmp.eq.s32.totalorder %s23, 1
      %p151 = por %p149, %p150
      %p152 = scmp.ne.s32.totalorder %s143, %s144
      %p153 = scmp.eq.s32.totalorder %s23, 0
      %p154 = por %p152, %p153
      %p155 = scmp.ne.s32.totalorder %s143, %s144
      %p156 = scmp.eq.s32.totalorder %s24, 1
      %p157 = por %p155, %p156
      %p159 = scmp.ne.s32.totalorder %s144, %s158
      %p160 = scmp.eq.s32.totalorder %s24, 0
      %p161 = por %p159, %p160
      %s162 = ssub.s32 %s18, %s25
      %p163 = scmp.eq.s32.totalorder %s162, 0
      %s165 = sadd.s32 %s164, 1
      %s166 = scalar_select %p163, %s164, %s165
      %p169 = pneg %p163
      %p170 = scmp.eq.s32.totalorder %s18, 1
      %p171 = por %p169, %p170
      %p172 = scmp.ne.s32.totalorder %s164, %s167
      %p173 = scmp.eq.s32.totalorder %s18, 0
      %p174 = por %p172, %p173
      %p175 = scmp.ne.s32.totalorder %s164, %s167
      %p176 = scmp.eq.s32.totalorder %s23, 1
      %p177 = por %p175, %p176
      %p178 = scmp.ne.s32.totalorder %s167, %s168
      %p179 = scmp.eq.s32.totalorder %s23, 0
      %p180 = por %p178, %p179
      %p181 = scmp.ne.s32.totalorder %s167, %s168
      %p182 = scmp.eq.s32.totalorder %s24, 1
      %p183 = por %p181, %p182
      %p185 = scmp.ne.s32.totalorder %s168, %s184
      %p186 = scmp.eq.s32.totalorder %s24, 0
      %p187 = por %p185, %p186
      %p188 = scmp.le.s32.totalorder 1, %s18
      %p189 = scmp.lt.s32.totalorder %s18, 3
      %p190 = pnand %p188, %p189
      %p191 = pneg %p190
      // Predicated region
      $region9: #{tpu_custom_call.1} parent=5 // pred_check
        _
      $region10: #{tpu_custom_call.1} parent=5 // pred_check_branch
        %193 = sbr.rel (%p190) target = $region12
      $region11: #{tpu_custom_call.1} parent=5 // pred_region
        %s194 = ssub.s32 %s18, 1
        // Predicated region
        $region13: #{tpu_custom_call.1} parent=11 // pred_check
          %p195 = pneg %p91
        $region14: #{tpu_custom_call.1} parent=11 // pred_check_branch
          %197 = sbr.rel (%p195) target = $region16
        $region15: #{tpu_custom_call.1} parent=11 // pred_region
          _
        $region16: #{tpu_custom_call.1} parent=11 // pred_fallthru
          _
        // Predicated region
        $region17: #{tpu_custom_call.1} parent=11 // pred_check
          %p198 = pneg %p112
        $region18: #{tpu_custom_call.1} parent=11 // pred_check_branch
          %200 = sbr.rel (%p198) target = $region20
        $region19: #{tpu_custom_call.1} parent=11 // pred_region
          _
        $region20: #{tpu_custom_call.1} parent=11 // pred_fallthru
          _
        // Predicated region
        $region21: #{tpu_custom_call.1} parent=11 // pred_check
          %p201 = pneg %p133
        $region22: #{tpu_custom_call.1} parent=11 // pred_check_branch
          %203 = sbr.rel (%p201) target = $region24
        $region23: #{tpu_custom_call.1} parent=11 // pred_region
          _
        $region24: #{tpu_custom_call.1} parent=11 // pred_fallthru
          _
        // Predicated region
        $region25: #{tpu_custom_call.1} parent=11 // pred_check
          %p204 = pneg %p154
        $region26: #{tpu_custom_call.1} parent=11 // pred_check_branch
          %206 = sbr.rel (%p204) target = $region28
        $region27: #{tpu_custom_call.1} parent=11 // pred_region
          _
        $region28: #{tpu_custom_call.1} parent=11 // pred_fallthru
          _
      $region12: #{tpu_custom_call.1} parent=5 // pred_fallthru
        _
      %p207 = scmp.lt.s32.totalorder %s18, 2
      // Predicated region
      $region29: #{tpu_custom_call.1} parent=5 // pred_check
        %p208 = pneg %p207
      $region30: #{tpu_custom_call.1} parent=5 // pred_check_branch
        %210 = sbr.rel (%p208) target = $region32
      $region31: #{tpu_custom_call.1} parent=5 // pred_region
        // Predicated region
        $region33: #{tpu_custom_call.1} parent=31 // pred_check
          %p211 = pneg %p38
        $region34: #{tpu_custom_call.1} parent=31 // pred_check_branch
          %213 = sbr.rel (%p211) target = $region36
        $region35: #{tpu_custom_call.1} parent=31 // pred_region
          %p214 = scmp.lt.s32.totalorder %s18, 1
          %s215 = scalar_select %p214, %s18, 1
          %s216 = smul.addr %s215, 8
          %s217 = scalar_lea.vmem %s0, %s216
        $region36: #{tpu_custom_call.1} parent=31 // pred_fallthru
          _
        // Predicated region
        $region37: #{tpu_custom_call.1} parent=31 // pred_check
          %p218 = pneg %p64
        $region38: #{tpu_custom_call.1} parent=31 // pred_check_branch
          %220 = sbr.rel (%p218) target = $region40
        $region39: #{tpu_custom_call.1} parent=31 // pred_region
          %s221 = sand.u32 %s54, 1
          %s222 = scalar_lea.sflag [#allocation3], %s221
          %s223 = sand.u32 %s54, 1
          %s224 = smul.addr %s223, 128
          %s225 = scalar_lea.vmem [#allocation2], %s224
          %s227 = ssub.s32 2048, 2048
          %228 = vsyncadd %s222, %s227
          %s229 = smul.addr %s18, 128
          %s230 = scalar_lea.hbm %s1, %s229
          %s231 = sshll.u32 %s225, 4
          %s232 = int_to_ptr.vmem [resolvable:$true] %s231
          %237 = dma.hbm_to_vmem [thread:$0]  %s230, 2048, %s232, %s222, 256, 128, 8
        $region40: #{tpu_custom_call.1} parent=31 // pred_fallthru
          _
      $region32: #{tpu_custom_call.1} parent=5 // pred_fallthru
        _
      %p238 = scmp.le.s32.totalorder 1, %s18
      %p239 = scmp.lt.s32.totalorder %s18, 3
      %p240 = pnand %p238, %p239
      %p241 = pneg %p240
      // Predicated region
      $region41: #{tpu_custom_call.1} parent=5 // pred_check
        _
      $region42: #{tpu_custom_call.1} parent=5 // pred_check_branch
        %243 = sbr.rel (%p240) target = $region44
      $region43: #{tpu_custom_call.1} parent=5 // pred_region
        %s244 = ssub.s32 %s18, 1
        %s245 = sand.u32 %s57, 1
        %s246 = scalar_lea.sflag [#allocation3], %s245
        %s247 = sand.u32 %s57, 1
        %s248 = smul.addr %s247, 128
        %s249 = scalar_lea.vmem [#allocation2], %s248
        // Predicated region
        $region45: #{tpu_custom_call.1} parent=43 // pred_check
          %p250 = pneg %p70
        $region46: #{tpu_custom_call.1} parent=43 // pred_check_branch
          %252 = sbr.rel (%p250) target = $region48
        $region47: #{tpu_custom_call.1} parent=43 // pred_region
          %253 = dma.done %s246, 2048
        $region48: #{tpu_custom_call.1} parent=43 // pred_fallthru
          _
        %p254 = scmp.lt.s32.totalorder %s23, 1
        %s255 = scalar_select %p254, %s23, 1
        %s256 = smul.addr %s255, 8
        %s257 = scalar_lea.vmem %s0, %s256
        %p258 = pneg %p44
        %p259 = pneg %p41
        %s260 = sand.u32 %s57, 1
        %s261 = scalar_lea.sflag [#allocation3], %s260
        %s262 = sand.u32 %s57, 1
        %s263 = smul.addr %s262, 128
        %s264 = scalar_lea.vmem [#allocation2], %s263
        %p265 = pneg %p70
        %p266 = pneg %p67
        %p267 = pneg %p91
        %p268 = pneg %p88
        %p269 = pneg %p112
        %p270 = pneg %p109
        %p271 = pneg %p133
        %p272 = pneg %p130
        %p273 = pneg %p154
        %p274 = pneg %p151
        %p275 = pneg %p180
        %p276 = pneg %p177
        %s277 = sand.u32 %s167, 1
        %s278 = scalar_lea.sflag [#allocation4], %s277
        %s279 = sand.u32 %s167, 1
        %s280 = smul.addr %s279, 8
        %s281 = scalar_lea.vmem [#allocation5], %s280
        %p282 = scmp.lt.s32.totalorder %s23, 1
        %s283 = scalar_select %p282, %s23, 1
        %s284 = smul.addr %s283, 8
        %s285 = scalar_lea.vmem %s0, %s284
        %v286 = vld [vmem:[%s285] sm:$0xff]
        %v287 = vld [vmem:[%s2] sm:$0xff]
        %v288 = vld [vmem:[%s2 + $0x8] sm:$0xff]
        %v289 = vld [vmem:[%s2 + $0x10] sm:$0xff]
        %v290 = vld [vmem:[%s2 + $0x18] sm:$0xff]
        %v291 = vld [vmem:[%s4] sm:$0x1]
        %v293 = vlaneseq
        %v294 = vshrl.u32 %v293, 7
        %v295 = vsub.s32 0, %v294
        %v296 = vrot.slane %v291, %v295
        %vm298 = vcmask 261120
        %v300 = vsel %vm298, %v286, 0
        %302 = vmatprep.subr.mxu0 0.0
        %303 = vmatpush1.msra.mxu0 %v287
        %304 = vmatprep.subr.mxu0 0.0
        %305 = vmatpush1.msra.mxu0 %v288
        %306 = vmatprep.subr.mxu0 0.0
        %307 = vmatpush1.msra.mxu0 %v289
        %308 = vmatprep.subr.mxu0 0.0
        %309 = vmatpush1.msra.mxu0 %v290
        %310 = vmatprep.subr.mxu0 0.0
        %311 = vmatpush1.msra.mxu0 0.0
        %312 = vmatprep.subr.mxu0 0.0
        %313 = vmatpush1.msra.mxu0 0.0
        %314 = vmatprep.subr.mxu0 0.0
        %315 = vmatpush1.msra.mxu0 0.0
        %316 = vmatprep.subr.mxu0 0.0
        %317 = vmatpush1.msra.mxu0 0.0
        %318 = vmatprep.subr.mxu0 0.0
        %319 = vmatpush1.msra.mxu0 0.0
        %320 = vmatprep.subr.mxu0 0.0
        %321 = vmatpush1.msra.mxu0 0.0
        %322 = vmatprep.subr.mxu0 0.0
        %323 = vmatpush1.msra.mxu0 0.0
        %324 = vmatprep.subr.mxu0 0.0
        %325 = vmatpush1.msra.mxu0 0.0
        %326 = vmatprep.subr.mxu0 0.0
        %327 = vmatpush1.msra.mxu0 0.0
        %328 = vmatprep.subr.mxu0 0.0
        %329 = vmatpush1.msra.mxu0 0.0
        %330 = vmatprep.subr.mxu0 0.0
        %331 = vmatpush1.msra.mxu0 0.0
        %332 = vmatprep.subr.mxu0 0.0
        %333 = vmatpush1.msra.mxu0 0.0
        %334 = vmatprep.subr.mxu0 0.0
        %335 = vmatpush1.msra.mxu0 0.0
        %336 = vmatprep.subr.mxu0 0.0
        %337 = vmatpush1.msra.mxu0 0.0
        %338 = vmatprep.subr.mxu0 0.0
        %339 = vmatpush1.msra.mxu0 0.0
        %340 = vmatprep.subr.mxu0 0.0
        %341 = vmatpush1.msra.mxu0 0.0
        %342 = vmatprep.subr.mxu0 0.0
        %343 = vmatpush1.msra.mxu0 0.0
        %344 = vmatprep.subr.mxu0 0.0
        %345 = vmatpush1.msra.mxu0 0.0
        %346 = vmatprep.subr.mxu0 0.0
        %347 = vmatpush1.msra.mxu0 0.0
        %348 = vmatprep.subr.mxu0 0.0
        %349 = vmatpush1.msra.mxu0 0.0
        %350 = vmatprep.subr.mxu0 0.0
        %351 = vmatpush1.msra.mxu0 0.0
        %352 = vmatprep.subr.mxu0 0.0
        %353 = vmatpush1.msra.mxu0 0.0
        %354 = vmatprep.subr.mxu0 0.0
        %355 = vmatpush1.msra.mxu0 0.0
        %356 = vmatprep.subr.mxu0 0.0
        %357 = vmatpush1.msra.mxu0 0.0
        %358 = vmatprep.subr.mxu0 0.0
        %359 = vmatpush1.msra.mxu0 0.0
        %360 = vmatprep.subr.mxu0 0.0
        %361 = vmatpush1.msra.mxu0 0.0
        %362 = vmatprep.subr.mxu0 0.0
        %363 = vmatpush1.msra.mxu0 0.0
        %364 = vmatprep.subr.mxu0 0.0
        %365 = vmatpush1.msra.mxu0 0.0
        %366 = vmatprep.mubr.f32.mxu0 0.0
        %367 = vmatmul.mubr.f32.gmra.mrb[0].mxu0 %v300
        %v368 = vpop.f32.mrb[0].mxu0
        %v369 = vadd.f32 %v296, %v368
        %v370 = vpop.f32.mrb[0].mxu0
        %371 = vdwg.mxu0
        %v372 = vld [vmem:[%s249] sm:$0xff]
        %v373 = vld [vmem:[%s249 + $0x8] sm:$0xff]
        %v374 = vld [vmem:[%s249 + $0x10] sm:$0xff]
        %v375 = vld [vmem:[%s249 + $0x18] sm:$0xff]
        %v376 = vld [vmem:[%s249 + $0x20] sm:$0xff]
        %v377 = vld [vmem:[%s249 + $0x28] sm:$0xff]
        %v378 = vld [vmem:[%s249 + $0x30] sm:$0xff]
        %v379 = vld [vmem:[%s249 + $0x38] sm:$0xff]
        %v380 = vld [vmem:[%s249 + $0x40] sm:$0xff]
        %v381 = vld [vmem:[%s249 + $0x48] sm:$0xff]
        %v382 = vld [vmem:[%s249 + $0x50] sm:$0xff]
        %v383 = vld [vmem:[%s249 + $0x58] sm:$0xff]
        %v384 = vld [vmem:[%s249 + $0x60] sm:$0xff]
        %v385 = vld [vmem:[%s249 + $0x68] sm:$0xff]
        %v386 = vld [vmem:[%s249 + $0x70] sm:$0xff]
        %v387 = vld [vmem:[%s249 + $0x78] sm:$0xff]
        %v388 = vld [vmem:[%s3] sm:$0xff]
        %v389 = vld [vmem:[%s3 + $0x8] sm:$0xff]
        %v390 = vld [vmem:[%s3 + $0x10] sm:$0xff]
        %v391 = vld [vmem:[%s3 + $0x18] sm:$0xff]
        %v393 = vsel %vm298, %v372, 0
        %v396 = vsel %vm298, %v373, 0
        %v399 = vsel %vm298, %v374, 0
        %v402 = vsel %vm298, %v375, 0
        %v405 = vsel %vm298, %v376, 0
        %v408 = vsel %vm298, %v377, 0
        %v411 = vsel %vm298, %v378, 0
        %v414 = vsel %vm298, %v379, 0
        %v417 = vsel %vm298, %v380, 0
        %v420 = vsel %vm298, %v381, 0
        %v423 = vsel %vm298, %v382, 0
        %v426 = vsel %vm298, %v383, 0
        %v429 = vsel %vm298, %v384, 0
        %v432 = vsel %vm298, %v385, 0
        %v435 = vsel %vm298, %v386, 0
        %v438 = vsel %vm298, %v387, 0
        %440 = vmatprep.subr.mxu0 0.0
        %441 = vmatpush1.msra.mxu0 %v388
        %442 = vmatprep.subr.mxu0 0.0
        %443 = vmatpush1.msra.mxu0 %v389
        %444 = vmatprep.subr.mxu0 0.0
        %445 = vmatpush1.msra.mxu0 %v390
        %446 = vmatprep.subr.mxu0 0.0
        %447 = vmatpush1.msra.mxu0 %v391
        %448 = vmatprep.subr.mxu0 0.0
        %449 = vmatpush1.msra.mxu0 0.0
        %450 = vmatprep.subr.mxu0 0.0
        %451 = vmatpush1.msra.mxu0 0.0
        %452 = vmatprep.subr.mxu0 0.0
        %453 = vmatpush1.msra.mxu0 0.0
        %454 = vmatprep.subr.mxu0 0.0
        %455 = vmatpush1.msra.mxu0 0.0
        %456 = vmatprep.subr.mxu0 0.0
        %457 = vmatpush1.msra.mxu0 0.0
        %458 = vmatprep.subr.mxu0 0.0
        %459 = vmatpush1.msra.mxu0 0.0
        %460 = vmatprep.subr.mxu0 0.0
        %461 = vmatpush1.msra.mxu0 0.0
        %462 = vmatprep.subr.mxu0 0.0
        %463 = vmatpush1.msra.mxu0 0.0
        %464 = vmatprep.subr.mxu0 0.0
        %465 = vmatpush1.msra.mxu0 0.0
        %466 = vmatprep.subr.mxu0 0.0
        %467 = vmatpush1.msra.mxu0 0.0
        %468 = vmatprep.subr.mxu0 0.0
        %469 = vmatpush1.msra.mxu0 0.0
        %470 = vmatprep.subr.mxu0 0.0
        %471 = vmatpush1.msra.mxu0 0.0
        %472 = vmatprep.subr.mxu0 0.0
        %473 = vmatpush1.msra.mxu0 0.0
        %474 = vmatprep.subr.mxu0 0.0
        %475 = vmatpush1.msra.mxu0 0.0
        %476 = vmatprep.subr.mxu0 0.0
        %477 = vmatpush1.msra.mxu0 0.0
        %478 = vmatprep.subr.mxu0 0.0
        %479 = vmatpush1.msra.mxu0 0.0
        %480 = vmatprep.subr.mxu0 0.0
        %481 = vmatpush1.msra.mxu0 0.0
        %482 = vmatprep.subr.mxu0 0.0
        %483 = vmatpush1.msra.mxu0 0.0
        %484 = vmatprep.subr.mxu0 0.0
        %485 = vmatpush1.msra.mxu0 0.0
        %486 = vmatprep.subr.mxu0 0.0
        %487 = vmatpush1.msra.mxu0 0.0
        %488 = vmatprep.subr.mxu0 0.0
        %489 = vmatpush1.msra.mxu0 0.0
        %490 = vmatprep.subr.mxu0 0.0
        %491 = vmatpush1.msra.mxu0 0.0
        %492 = vmatprep.subr.mxu0 0.0
        %493 = vmatpush1.msra.mxu0 0.0
        %494 = vmatprep.subr.mxu0 0.0
        %495 = vmatpush1.msra.mxu0 0.0
        %496 = vmatprep.subr.mxu0 0.0
        %497 = vmatpush1.msra.mxu0 0.0
        %498 = vmatprep.subr.mxu0 0.0
        %499 = vmatpush1.msra.mxu0 0.0
        %500 = vmatprep.subr.mxu0 0.0
        %501 = vmatpush1.msra.mxu0 0.0
        %502 = vmatprep.subr.mxu0 0.0
        %503 = vmatpush1.msra.mxu0 0.0
        %504 = vmatprep.mubr.f32.mxu0 0.0
        %505 = vmatmul.mubr.f32.gmra.mrb[0].mxu0 %v393
        %v506 = vpop.f32.mrb[0].mxu0
        %v507 = vadd.f32 0.0, %v506
        %v508 = vpop.f32.mrb[0].mxu0
        %509 = vmatprep.mubr.f32.mxu0 0.0
        %510 = vmatmul.mubr.f32.gmra.mrb[0].mxu0 %v396
        %v511 = vpop.f32.mrb[0].mxu0
        %v512 = vadd.f32 0.0, %v511
        %v513 = vpop.f32.mrb[0].mxu0
        %514 = vmatprep.mubr.f32.mxu0 0.0
        %515 = vmatmul.mubr.f32.gmra.mrb[0].mxu0 %v399
        %v516 = vpop.f32.mrb[0].mxu0
        %v517 = vadd.f32 0.0, %v516
        %v518 = vpop.f32.mrb[0].mxu0
        %519 = vmatprep.mubr.f32.mxu0 0.0
        %520 = vmatmul.mubr.f32.gmra.mrb[0].mxu0 %v402
        %v521 = vpop.f32.mrb[0].mxu0
        %v522 = vadd.f32 0.0, %v521
        %v523 = vpop.f32.mrb[0].mxu0
        %524 = vmatprep.mubr.f32.mxu0 0.0
        %525 = vmatmul.mubr.f32.gmra.mrb[0].mxu0 %v405
        %v526 = vpop.f32.mrb[0].mxu0
        %v527 = vadd.f32 0.0, %v526
        %v528 = vpop.f32.mrb[0].mxu0
        %529 = vmatprep.mubr.f32.mxu0 0.0
        %530 = vmatmul.mubr.f32.gmra.mrb[0].mxu0 %v408
        %v531 = vpop.f32.mrb[0].mxu0
        %v532 = vadd.f32 0.0, %v531
        %v533 = vpop.f32.mrb[0].mxu0
        %534 = vmatprep.mubr.f32.mxu0 0.0
        %535 = vmatmul.mubr.f32.gmra.mrb[0].mxu0 %v411
        %v536 = vpop.f32.mrb[0].mxu0
        %v537 = vadd.f32 0.0, %v536
        %v538 = vpop.f32.mrb[0].mxu0
        %539 = vmatprep.mubr.f32.mxu0 0.0
        %540 = vmatmul.mubr.f32.gmra.mrb[0].mxu0 %v414
        %v541 = vpop.f32.mrb[0].mxu0
        %v542 = vadd.f32 0.0, %v541
        %v543 = vpop.f32.mrb[0].mxu0
        %544 = vmatprep.mubr.f32.mxu0 0.0
        %545 = vmatmul.mubr.f32.gmra.mrb[0].mxu0 %v417
        %v546 = vpop.f32.mrb[0].mxu0
        %v547 = vadd.f32 0.0, %v546
        %v548 = vpop.f32.mrb[0].mxu0
        %549 = vmatprep.mubr.f32.mxu0 0.0
        %550 = vmatmul.mubr.f32.gmra.mrb[0].mxu0 %v420
        %v551 = vpop.f32.mrb[0].mxu0
        %v552 = vadd.f32 0.0, %v551
        %v553 = vpop.f32.mrb[0].mxu0
        %554 = vmatprep.mubr.f32.mxu0 0.0
        %555 = vmatmul.mubr.f32.gmra.mrb[0].mxu0 %v423
        %v556 = vpop.f32.mrb[0].mxu0
        %v557 = vadd.f32 0.0, %v556
        %v558 = vpop.f32.mrb[0].mxu0
        %559 = vmatprep.mubr.f32.mxu0 0.0
        %560 = vmatmul.mubr.f32.gmra.mrb[0].mxu0 %v426
        %v561 = vpop.f32.mrb[0].mxu0
        %v562 = vadd.f32 0.0, %v561
        %v563 = vpop.f32.mrb[0].mxu0
        %564 = vmatprep.mubr.f32.mxu0 0.0
        %565 = vmatmul.mubr.f32.gmra.mrb[0].mxu0 %v429
        %v566 = vpop.f32.mrb[0].mxu0
        %v567 = vadd.f32 0.0, %v566
        %v568 = vpop.f32.mrb[0].mxu0
        %569 = vmatprep.mubr.f32.mxu0 0.0
        %570 = vmatmul.mubr.f32.gmra.mrb[0].mxu0 %v432
        %v571 = vpop.f32.mrb[0].mxu0
        %v572 = vadd.f32 0.0, %v571
        %v573 = vpop.f32.mrb[0].mxu0
        %574 = vmatprep.mubr.f32.mxu0 0.0
        %575 = vmatmul.mubr.f32.gmra.mrb[0].mxu0 %v435
        %v576 = vpop.f32.mrb[0].mxu0
        %v577 = vadd.f32 0.0, %v576
        %v578 = vpop.f32.mrb[0].mxu0
        %579 = vmatprep.mubr.f32.mxu0 0.0
        %580 = vmatmul.mubr.f32.gmra.mrb[0].mxu0 %v438
        %v581 = vpop.f32.mrb[0].mxu0
        %v582 = vadd.f32 0.0, %v581
        %v583 = vpop.f32.mrb[0].mxu0
        %584 = vdwg.mxu0
        %v585 = vadd.f32 %v507, %v369
        %v586 = vadd.f32 %v512, %v369
        %v587 = vadd.f32 %v517, %v369
        %v588 = vadd.f32 %v522, %v369
        %v589 = vadd.f32 %v527, %v369
        %v590 = vadd.f32 %v532, %v369
        %v591 = vadd.f32 %v537, %v369
        %v592 = vadd.f32 %v542, %v369
        %v593 = vadd.f32 %v547, %v369
        %v594 = vadd.f32 %v552, %v369
        %v595 = vadd.f32 %v557, %v369
        %v596 = vadd.f32 %v562, %v369
        %v597 = vadd.f32 %v567, %v369
        %v598 = vadd.f32 %v572, %v369
        %v599 = vadd.f32 %v577, %v369
        %v600 = vadd.f32 %v582, %v369
        %v601 = vtanh.pop %v585
        %v602 = vtanh.pop %v586
        %v603 = vtanh.pop %v587
        %v604 = vtanh.pop %v588
        %v605 = vtanh.pop %v589
        %v606 = vtanh.pop %v590
        %v607 = vtanh.pop %v591
        %v608 = vtanh.pop %v592
        %v609 = vtanh.pop %v593
        %v610 = vtanh.pop %v594
        %v611 = vtanh.pop %v595
        %v612 = vtanh.pop %v596
        %v613 = vtanh.pop %v597
        %v614 = vtanh.pop %v598
        %v615 = vtanh.pop %v599
        %v616 = vtanh.pop %v600
        %v617 = vld [vmem:[%s5] sm:$0x1]
        %v619 = vlaneseq
        %v620 = vshrl.u32 %v619, 7
        %v621 = vsub.s32 0, %v620
        %v622 = vrot.slane %v617, %v621
        %v624 = vmul.f32 %v601, %v622
        %v625 = vmul.f32 %v602, %v622
        %v626 = vmul.f32 %v603, %v622
        %v627 = vmul.f32 %v604, %v622
        %v628 = vmul.f32 %v605, %v622
        %v629 = vmul.f32 %v606, %v622
        %v630 = vmul.f32 %v607, %v622
        %v631 = vmul.f32 %v608, %v622
        %v632 = vmul.f32 %v609, %v622
        %v633 = vmul.f32 %v610, %v622
        %v634 = vmul.f32 %v611, %v622
        %v635 = vmul.f32 %v612, %v622
        %v636 = vmul.f32 %v613, %v622
        %v637 = vmul.f32 %v614, %v622
        %v638 = vmul.f32 %v615, %v622
        %v639 = vmul.f32 %v616, %v622
        %vm640 = vcmask 195584
        %v641 = vsel %vm640, %v624, 0.0
        %642 = vadd.xlane.f32.xlu0 %v641
        %v643 = vpop.xlane.xlu0 %642
        %v644 = vsel %vm640, %v625, 0.0
        %645 = vadd.xlane.f32.xlu0 %v644
        %v646 = vpop.xlane.xlu0 %645
        %v647 = vsel %vm640, %v626, 0.0
        %648 = vadd.xlane.f32.xlu0 %v647
        %v649 = vpop.xlane.xlu0 %648
        %v650 = vsel %vm640, %v627, 0.0
        %651 = vadd.xlane.f32.xlu0 %v650
        %v652 = vpop.xlane.xlu0 %651
        %v653 = vsel %vm640, %v628, 0.0
        %654 = vadd.xlane.f32.xlu0 %v653
        %v655 = vpop.xlane.xlu0 %654
        %v656 = vsel %vm640, %v629, 0.0
        %657 = vadd.xlane.f32.xlu0 %v656
        %v658 = vpop.xlane.xlu0 %657
        %v659 = vsel %vm640, %v630, 0.0
        %660 = vadd.xlane.f32.xlu0 %v659
        %v661 = vpop.xlane.xlu0 %660
        %v662 = vsel %vm640, %v631, 0.0
        %663 = vadd.xlane.f32.xlu0 %v662
        %v664 = vpop.xlane.xlu0 %663
        %v665 = vsel %vm640, %v632, 0.0
        %666 = vadd.xlane.f32.xlu0 %v665
        %v667 = vpop.xlane.xlu0 %666
        %v668 = vsel %vm640, %v633, 0.0
        %669 = vadd.xlane.f32.xlu0 %v668
        %v670 = vpop.xlane.xlu0 %669
        %v671 = vsel %vm640, %v634, 0.0
        %672 = vadd.xlane.f32.xlu0 %v671
        %v673 = vpop.xlane.xlu0 %672
        %v674 = vsel %vm640, %v635, 0.0
        %675 = vadd.xlane.f32.xlu0 %v674
        %v676 = vpop.xlane.xlu0 %675
        %v677 = vsel %vm640, %v636, 0.0
        %678 = vadd.xlane.f32.xlu0 %v677
        %v679 = vpop.xlane.xlu0 %678
        %v680 = vsel %vm640, %v637, 0.0
        %681 = vadd.xlane.f32.xlu0 %v680
        %v682 = vpop.xlane.xlu0 %681
        %v683 = vsel %vm640, %v638, 0.0
        %684 = vadd.xlane.f32.xlu0 %v683
        %v685 = vpop.xlane.xlu0 %684
        %v686 = vsel %vm640, %v639, 0.0
        %687 = vadd.xlane.f32.xlu0 %v686
        %v688 = vpop.xlane.xlu0 %687
        %v705 = vlaneseq
        %v706 = vand.u32 %v705, 127
        %v707 = vlaneseq
        %v708 = vshrl.u32 %v707, 7
        %v709 = vsub.s32 %v706, %v708
        %v710 = vrot.slane %v643, %v709
        %v711 = vlaneseq
        %v712 = vshrl.u32 %v711, 7
        %v713 = vsub.s32 %v706, %v712
        %v714 = vrot.slane %v646, %v713
        %v715 = vlaneseq
        %v716 = vshrl.u32 %v715, 7
        %v717 = vsub.s32 %v706, %v716
        %v718 = vrot.slane %v649, %v717
        %v719 = vlaneseq
        %v720 = vshrl.u32 %v719, 7
        %v721 = vsub.s32 %v706, %v720
        %v722 = vrot.slane %v652, %v721
        %v723 = vlaneseq
        %v724 = vshrl.u32 %v723, 7
        %v725 = vsub.s32 %v706, %v724
        %v726 = vrot.slane %v655, %v725
        %v727 = vlaneseq
        %v728 = vshrl.u32 %v727, 7
        %v729 = vsub.s32 %v706, %v728
        %v730 = vrot.slane %v658, %v729
        %v731 = vlaneseq
        %v732 = vshrl.u32 %v731, 7
        %v733 = vsub.s32 %v706, %v732
        %v734 = vrot.slane %v661, %v733
        %v735 = vlaneseq
        %v736 = vshrl.u32 %v735, 7
        %v737 = vsub.s32 %v706, %v736
        %v738 = vrot.slane %v664, %v737
        %v739 = vlaneseq
        %v740 = vshrl.u32 %v739, 7
        %v741 = vsub.s32 %v706, %v740
        %v742 = vrot.slane %v667, %v741
        %v743 = vlaneseq
        %v744 = vshrl.u32 %v743, 7
        %v745 = vsub.s32 %v706, %v744
        %v746 = vrot.slane %v670, %v745
        %v747 = vlaneseq
        %v748 = vshrl.u32 %v747, 7
        %v749 = vsub.s32 %v706, %v748
        %v750 = vrot.slane %v673, %v749
        %v751 = vlaneseq
        %v752 = vshrl.u32 %v751, 7
        %v753 = vsub.s32 %v706, %v752
        %v754 = vrot.slane %v676, %v753
        %v755 = vlaneseq
        %v756 = vshrl.u32 %v755, 7
        %v757 = vsub.s32 %v706, %v756
        %v758 = vrot.slane %v679, %v757
        %v759 = vlaneseq
        %v760 = vshrl.u32 %v759, 7
        %v761 = vsub.s32 %v706, %v760
        %v762 = vrot.slane %v682, %v761
        %v763 = vlaneseq
        %v764 = vshrl.u32 %v763, 7
        %v765 = vsub.s32 %v706, %v764
        %v766 = vrot.slane %v685, %v765
        %v767 = vlaneseq
        %v768 = vshrl.u32 %v767, 7
        %v769 = vsub.s32 %v706, %v768
        %v770 = vrot.slane %v688, %v769
        %vm771 = vcmask 1041409
        %v772 = vsel %vm771, %v714, %v710
        %vm773 = vcmask 1042434
        %v774 = vsel %vm773, %v718, %v772
        %vm775 = vcmask 1043459
        %v776 = vsel %vm775, %v722, %v774
        %vm777 = vcmask 1044484
        %v778 = vsel %vm777, %v726, %v776
        %vm779 = vcmask 1045509
        %v780 = vsel %vm779, %v730, %v778
        %vm781 = vcmask 1046534
        %v782 = vsel %vm781, %v734, %v780
        %vm783 = vcmask 1047559
        %v784 = vsel %vm783, %v738, %v782
        %v785 = vsel %vm771, %v746, %v742
        %v786 = vsel %vm773, %v750, %v785
        %v787 = vsel %vm775, %v754, %v786
        %v788 = vsel %vm777, %v758, %v787
        %v789 = vsel %vm779, %v762, %v788
        %v790 = vsel %vm781, %v766, %v789
        %v791 = vsel %vm783, %v770, %v790
        %794 = vxpose.xlu0.b32.start [1/16] %v784, 128
        %795 = vxpose.xlu0.b32.cont [2/16] %v791, 128
        %796 = vxpose.xlu0.b32.cont [3/16] 0.0, 128
        %797 = vxpose.xlu0.b32.cont [4/16] 0.0, 128
        %798 = vxpose.xlu0.b32.cont [5/16] 0.0, 128
        %799 = vxpose.xlu0.b32.cont [6/16] 0.0, 128
        %800 = vxpose.xlu0.b32.cont [7/16] 0.0, 128
        %801 = vxpose.xlu0.b32.cont [8/16] 0.0, 128
        %802 = vxpose.xlu0.b32.cont [9/16] 0.0, 128
        %803 = vxpose.xlu0.b32.cont [10/16] 0.0, 128
        %804 = vxpose.xlu0.b32.cont [11/16] 0.0, 128
        %805 = vxpose.xlu0.b32.cont [12/16] 0.0, 128
        %806 = vxpose.xlu0.b32.cont [13/16] 0.0, 128
        %807 = vxpose.xlu0.b32.cont [14/16] 0.0, 128
        %808 = vxpose.xlu0.b32.cont [15/16] 0.0, 128
        %809 = vxpose.xlu0.b32.end [16/16] 0.0, 128
        %v810 = vpop.trf.xlu0
        %v811 = vpop.trf.xlu0
        %v812 = vpop.trf.xlu0
        %v813 = vpop.trf.xlu0
        %v814 = vpop.trf.xlu0
        %v815 = vpop.trf.xlu0
        %v816 = vpop.trf.xlu0
        %v817 = vpop.trf.xlu0
        %v818 = vpop.trf.xlu0
        %v819 = vpop.trf.xlu0
        %v820 = vpop.trf.xlu0
        %v821 = vpop.trf.xlu0
        %v822 = vpop.trf.xlu0
        %v823 = vpop.trf.xlu0
        %v824 = vpop.trf.xlu0
        %v825 = vpop.trf.xlu0
        %vm826 = vcmask 130048
        %v827 = vsel %vm826, %v810, -inf
        %828 = vmax.xlane.f32.xlu0 %v827
        %v829 = vpop.xlane.xlu0 %828
        %v830 = vsub.f32 %v810, %v829
        %v831 = vmul.f32 %v830, 1.442695
        %v832 = vpow.pop %v831
        %v833 = vsel %vm826, %v832, 0.0
        %834 = vadd.xlane.f32.xlu0 %v833
        %v835 = vpop.xlane.xlu0 %834
        %v836 = vrcp.pop %v835
        %v837 = vmul.f32 %v835, %v836
        %v838 = vsub.f32 2.0, %v837
        %v839 = vmul.f32 %v836, %v838
        %v840 = vmul.f32 %v832, %v839
        %841 = vst.msk [vmem:[%s281] sm:$0xff] %vm826, %v840
        %s842 = sand.u32 %s167, 1
        %s843 = scalar_lea.sflag [#allocation4], %s842
        %s844 = sand.u32 %s167, 1
        %s845 = smul.addr %s844, 8
        %s846 = scalar_lea.vmem [#allocation5], %s845
        // Predicated region
        $region49: #{tpu_custom_call.1} parent=43 // pred_check
          %p847 = pneg %p177
        $region50: #{tpu_custom_call.1} parent=43 // pred_check_branch
          %849 = sbr.rel (%p847) target = $region52
        $region51: #{tpu_custom_call.1} parent=43 // pred_region
          %s851 = ssub.s32 128, 128
          %852 = vsyncadd %s843, %s851
          %s853 = smul.addr %s23, 128
          %s854 = scalar_lea.hbm %s6, %s853
          %s856 = sshll.u32 %s846, 4
          %s857 = int_to_ptr.vmem [resolvable:$true] %s856
          %859 = dma.vmem_to_hbm [thread:$0]  %s857, 128, %s854, %s843
        $region52: #{tpu_custom_call.1} parent=43 // pred_fallthru
          _
      $region44: #{tpu_custom_call.1} parent=5 // pred_fallthru
        _
      %p860 = scmp.le.s32.totalorder 2, %s18
      // Predicated region
      $region53: #{tpu_custom_call.1} parent=5 // pred_check
        %p861 = pneg %p860
      $region54: #{tpu_custom_call.1} parent=5 // pred_check_branch
        %863 = sbr.rel (%p861) target = $region56
      $region55: #{tpu_custom_call.1} parent=5 // pred_region
        %s864 = ssub.s32 %s18, 2
        // Predicated region
        $region57: #{tpu_custom_call.1} parent=55 // pred_check
          %p865 = pneg %p183
        $region58: #{tpu_custom_call.1} parent=55 // pred_check_branch
          %867 = sbr.rel (%p865) target = $region60
        $region59: #{tpu_custom_call.1} parent=55 // pred_region
          %s868 = sand.u32 %s168, 1
          %s869 = scalar_lea.sflag [#allocation4], %s868
          %s870 = sand.u32 %s168, 1
          %s871 = smul.addr %s870, 8
          %s872 = scalar_lea.vmem [#allocation5], %s871
          %873 = dma.done %s869, 128
        $region60: #{tpu_custom_call.1} parent=55 // pred_fallthru
          _
      $region56: #{tpu_custom_call.1} parent=5 // pred_fallthru
        _
    $region6: #{tpu_custom_call.1} parent=1 // loop_footer
      %s22 = sadd.s32 1, %s18
    $region7: #{tpu_custom_call.1} parent=1 // loop_footer_branch
      %17 = sbr.rel target = $region3
    $region8: #{tpu_custom_call.1} parent=1 // loop_exit
      _
    %874 = vsyncpa [#allocation3], 1
    %s875 = scalar_lea.sflag [#allocation3], 1
    %876 = vsyncpa %s875, 1
    %877 = vsyncpa [#allocation4], 1
    %s878 = scalar_lea.sflag [#allocation4], 1
    %879 = vsyncpa %s878, 1

</llo_original>
